<compile_context>
chip_gen: v7x
topology: tpu7x:2x2x1
jax: 0.10.0
libtpu: 0.0.40
codegen_flags: <defaults>
</compile_context>

<pallas_src>
from typing import NamedTuple

import jax
import jax.numpy as jnp
from jax import lax
from jax.experimental import pallas as pl
from jax.experimental.pallas import tpu as pltpu

# ---- Mono4DGSLoss default hyper-parameters ---------------------------------
LAMBDA_DEPTH = 1.0
LAMBDA_POSE = 0.1
LAMBDA_DEFORM = 1e-4
LAMBDA_RIGID = 1e-3
# DepthReprojectionLoss defaults
CONF_THRESHOLD = 0.1
MAX_DEPTH = 100.0
# PoseConsistencyLoss defaults
MAX_DISTANCE = 1.0
LANDMARK_WEIGHT = 1.0
# DeformationRegularizer defaults
BASIS_WEIGHT = 1e-4
# RigidRegularizer defaults
ROT_WEIGHT = 1e-3
TRANS_WEIGHT = 1e-3

_LANE = 128  # depth-chunk width (one vreg of lanes)


class RigidTransform(NamedTuple):
    rotation_params: jax.Array      # [C, 3]
    translation_params: jax.Array   # [C, 3]


# ---------------------------------------------------------------------------
# Fused kernel: photometric L1, confidence-weighted depth reprojection sums,
# and pose-consistency sums.  Outputs are resident per-core accumulators.
# ---------------------------------------------------------------------------
def _fused_loss_kernel(img_a_ref, img_b_ref, idb_ref, gtd_ref, conf_ref,
                       depths_ref, xpos_ref, lmk_ref,
                       photo_ref, werr_ref, wconf_ref, psq_ref, pcnt_ref):
    core = pl.program_id(0)
    step = pl.program_id(1)

    # --- init the resident per-core accumulator blocks -----------------------
    @pl.when(step == 0)
    def _init():
        photo_ref[...] = jnp.zeros_like(photo_ref)
        werr_ref[...] = jnp.zeros_like(werr_ref)
        wconf_ref[...] = jnp.zeros_like(wconf_ref)
        psq_ref[...] = jnp.zeros_like(psq_ref)
        pcnt_ref[...] = jnp.zeros_like(pcnt_ref)

    # --- photometric L1 partial sum (lane-dense image tile) ------------------
    photo_ref[...] += jnp.sum(jnp.abs(img_a_ref[...] - img_b_ref[...]))

    # --- depth reprojection partial sums -------------------------------------
    tile_r, w = idb_ref.shape
    n_chunks, kc = depths_ref.shape

    def row_body(row, carry):
        werr_acc, wconf_acc = carry
        idb_row = idb_ref[pl.ds(row, 1), :]        # (1, W) int32
        gtd_row = gtd_ref[pl.ds(row, 1), :]        # (1, W)
        cf_row = conf_ref[pl.ds(row, 1), :]        # (1, W)
        valid = ((cf_row > CONF_THRESHOLD) & (gtd_row > 0.0) &
                 (gtd_row < MAX_DEPTH) & (idb_row >= 0))
        fcf = cf_row * valid.astype(jnp.float32)

        # gather splat_depths[id_buffer] with bounded 128-wide one-hot chunks
        # contracted on the MXU (no (H, W, N) broadcast, no XLU lane-reduce).
        def chunk_body(ci, pred_row):
            base = ci * kc
            cand = lax.broadcasted_iota(jnp.int32, (kc, w), 0) + base   # (kc, W)
            onehot = (cand == idb_row).astype(jnp.float32)              # (kc, W)
            dchunk = depths_ref[pl.ds(ci, 1), :]                        # (1, kc)
            return pred_row + jnp.dot(dchunk, onehot,
                                      preferred_element_type=jnp.float32)

        pred_row = lax.fori_loop(0, n_chunks, chunk_body,
                                 jnp.zeros((1, w), jnp.float32))        # (1, W)

        # TODO(synk): compute_depth_loss is undefined in the reference module;
        #             stand-in = confidence-weighted mean L1 over valid pixels.
        werr_acc = werr_acc + jnp.sum(fcf * jnp.abs(pred_row - gtd_row))
        wconf_acc = wconf_acc + jnp.sum(fcf)
        return werr_acc, wconf_acc

    werr_t, wconf_t = lax.fori_loop(0, tile_r, row_body,
                                    (jnp.float32(0.0), jnp.float32(0.0)))
    werr_ref[...] += werr_t
    wconf_ref[...] += wconf_t

    # --- pose consistency (tiny resident inputs), computed exactly once ------
    @pl.when((core == 0) & (step == 0))
    def _pose():
        x_t = xpos_ref[...]                        # (3, N)  lane-dense on N
        lmk = lmk_ref[...]                         # (M, 3)  landmarks in cam frame
        d2 = ((lmk[:, 0:1] - x_t[0:1, :]) ** 2 +
              (lmk[:, 1:2] - x_t[1:2, :]) ** 2 +
              (lmk[:, 2:3] - x_t[2:3, :]) ** 2)    # (M, N)
        min_d2 = jnp.min(d2, axis=1, keepdims=True)                     # (M, 1)
        # ||x[argmin] - l||^2 == min_d2, and (sqrt(d2) < t) == (d2 < t^2)
        valid = (min_d2 < MAX_DISTANCE * MAX_DISTANCE).astype(jnp.float32)
        psq_ref[...] += jnp.sum(min_d2 * valid)
        pcnt_ref[...] += jnp.sum(valid)


def _pick_tile_rows(h, w, c):
    """Largest multiple-of-8 divisor of h (<=256) with double-buffered inputs
    fitting a ~20 MiB VMEM budget (safe for v7x's smaller VMEM)."""
    bytes_per_row = (2 * c + 3) * w * 4           # 2 images (c rows each) + 3 maps
    budget = 20 * 1024 * 1024
    best = None
    for t in range(8, min(h, 256) + 1, 8):
        if h % t == 0 and 2 * bytes_per_row * t <= budget:
            best = t
    if best is None:
        best = h                                   # single full-height block
    return best


# ---------------------------------------------------------------------------
# Wrapper: full Mono4DGSLoss forward (total loss scalar).
# ---------------------------------------------------------------------------
@jax.jit
def mono4dgs_loss(rendered_image, gt_image, splat_positions, splat_depths,
                  id_buffer, gt_depth, depth_confidence, camera_pose,
                  landmarks_3d, landmarks_2d, camera_intrinsics,
                  basis_matrices, time_coefficients,
                  rigid_rotation_params, rigid_translation_params):
    c_ch, h, w = rendered_image.shape
    n = splat_positions.shape[0]
    m = landmarks_3d.shape[0]

    tile_r = _pick_tile_rows(h, w, c_ch)
    num_tiles = h // tile_r
    n_cores = 2 if (num_tiles >= 2 and num_tiles % 2 == 0) else 1
    spc = num_tiles // n_cores                     # row-tile steps per core

    n_chunks = pl.cdiv(n, _LANE)
    n_pad = n_chunks * _LANE

    img_a = rendered_image.astype(jnp.float32).reshape(c_ch * h, w)
    img_b = gt_image.astype(jnp.float32).reshape(c_ch * h, w)
    idb = id_buffer.astype(jnp.int32)
    gtd = gt_depth.astype(jnp.float32)
    conf = depth_confidence.astype(jnp.float32)
    depths2d = jnp.pad(splat_depths.astype(jnp.float32),
                       (0, n_pad - n)).reshape(n_chunks, _LANE)
    xpos_t = splat_positions.astype(jnp.float32).T           # (3, N)

    # landmarks -> camera frame (tiny 4x4 matmul, glue in plain JAX)
    ones = jnp.ones((m, 1), dtype=jnp.float32)
    lmk_hom = jnp.concatenate([landmarks_3d.astype(jnp.float32), ones], axis=1)
    lmk_cam = (camera_pose.astype(jnp.float32) @ lmk_hom.T).T[:, :3]  # (M, 3)

    acc_shape = jax.ShapeDtypeStruct((n_cores, 8, _LANE), jnp.float32)
    acc_spec = pl.BlockSpec((1, 8, _LANE), lambda c, r: (c, 0, 0))

    def row_map(c, r):
        return (c * spc + r, 0)

    def const_map(c, r):
        return (0, 0)

    outs = pl.pallas_call(
        _fused_loss_kernel,
        out_shape=(acc_shape,) * 5,
        grid=(n_cores, spc),
        in_specs=[
            pl.BlockSpec((c_ch * tile_r, w), row_map),     # rendered image rows
            pl.BlockSpec((c_ch * tile_r, w), row_map),     # gt image rows
            pl.BlockSpec((tile_r, w), row_map),            # id_buffer rows
            pl.BlockSpec((tile_r, w), row_map),            # gt_depth rows
            pl.BlockSpec((tile_r, w), row_map),            # confidence rows
            pl.BlockSpec((n_chunks, _LANE), const_map),    # splat depths (resident)
            pl.BlockSpec((3, n), const_map),               # splat positions^T (resident)
            pl.BlockSpec((m, 3), const_map),               # landmarks in cam frame
        ],
        out_specs=(acc_spec,) * 5,
        compiler_params=pltpu.CompilerParams(
            dimension_semantics=("parallel", "arbitrary"),
            vmem_limit_bytes=48 * 1024 * 1024),
    )(img_a, img_b, idb, gtd, conf, depths2d, xpos_t, lmk_cam)

    photo_sum, werr_sum, wconf_sum, pose_sq, pose_cnt = [
        jnp.sum(o[:, 0, 0]) for o in outs]

    # Tiny regularizer reductions stay in plain JAX (removed from hot kernel).
    basis_sq = jnp.sum(jnp.square(basis_matrices.astype(jnp.float32)))
    rot_sq = jnp.sum(jnp.square(rigid_rotation_params.astype(jnp.float32)))
    trans_sq = jnp.sum(jnp.square(rigid_translation_params.astype(jnp.float32)))

    # assemble (data-dependent early returns replaced by jnp.where)
    photometric_loss = photo_sum / jnp.float32(rendered_image.size)
    depth_loss = jnp.where(wconf_sum > 0.0,
                           werr_sum / jnp.maximum(wconf_sum, 1e-12),
                           jnp.float32(0.0))
    pose_mse = jnp.where(pose_cnt > 0.0,
                         pose_sq / jnp.maximum(pose_cnt * 3.0, 1.0),
                         jnp.float32(0.0))
    pose_loss = LANDMARK_WEIGHT * pose_mse
    # DeformationRegularizer: temporal term inactive (time_coefficients is 1-D),
    # spatial term inactive (neighbor_ids is None) — same as reference defaults.
    deform_loss = BASIS_WEIGHT * basis_sq
    rigid_loss = ROT_WEIGHT * rot_sq + TRANS_WEIGHT * trans_sq

    total = (photometric_loss
             + LAMBDA_DEPTH * depth_loss
             + LAMBDA_POSE * pose_loss
             + LAMBDA_DEFORM * deform_loss
             + LAMBDA_RIGID * rigid_loss)
    return total


if __name__ == "__main__":
    # Small but non-trivial shapes: exercises the 2-core parallel split,
    # multi-step row tiling, and multiple 128-wide splat-depth chunks.
    H, W, N, M, R, CLUSTERS = 1024, 128, 200, 48, 4, 8
    key = jax.random.PRNGKey(0)
    keys = jax.random.split(key, 13)

    rendered_image = jax.random.uniform(keys[0], (3, H, W), jnp.float32)
    gt_image = jax.random.uniform(keys[1], (3, H, W), jnp.float32)
    splat_positions = jax.random.normal(keys[2], (N, 3), jnp.float32)
    splat_depths = jax.random.uniform(keys[3], (N,), jnp.float32, 0.5, 10.0)
    id_buffer = jax.random.randint(keys[4], (H, W), -1, N, jnp.int32)
    gt_depth = jax.random.uniform(keys[5], (H, W), jnp.float32, 0.1, 20.0)
    depth_confidence = jax.random.uniform(keys[6], (H, W), jnp.float32)
    camera_pose = jnp.eye(4, dtype=jnp.float32).at[:3, 3].set(
        jnp.array([0.05, -0.02, 0.1], jnp.float32))
    landmarks_3d = splat_positions[:M] + 0.05 * jax.random.normal(
        keys[7], (M, 3), jnp.float32)
    landmarks_2d = jax.random.uniform(keys[8], (M, 2), jnp.float32) * W   # unused in fwd
    camera_intrinsics = jnp.array([[100.0, 0.0, W / 2.0],
                                   [0.0, 100.0, H / 2.0],
                                   [0.0, 0.0, 1.0]], jnp.float32)          # unused in fwd
    basis_matrices = 0.1 * jax.random.normal(keys[9], (N, 3, R), jnp.float32)
    time_coefficients = jax.random.normal(keys[10], (R,), jnp.float32)     # 1-D -> no temporal term
    rigid_transforms = RigidTransform(
        rotation_params=0.01 * jax.random.normal(keys[11], (CLUSTERS, 3), jnp.float32),
        translation_params=0.01 * jax.random.normal(keys[12], (CLUSTERS, 3), jnp.float32),
    )

    total = mono4dgs_loss(
        rendered_image, gt_image, splat_positions, splat_depths,
        id_buffer, gt_depth, depth_confidence, camera_pose,
        landmarks_3d, landmarks_2d, camera_intrinsics,
        basis_matrices, time_coefficients,
        rigid_transforms.rotation_params, rigid_transforms.translation_params,
    )
    jax.block_until_ready(total)
    if not bool(jnp.isfinite(total)):
        raise RuntimeError("non-finite total loss")
    print("KERNEL_OK")
</pallas_src>

<mosaic_0001>
module attributes {stable_mosaic.version = 11 : i64} {
  func.func @_fused_loss_kernel(%arg0: i32, %arg1: i32, %arg2: memref<768x128xf32, #tpu.memory_space<vmem>>, %arg3: memref<768x128xf32, #tpu.memory_space<vmem>>, %arg4: memref<256x128xi32, #tpu.memory_space<vmem>>, %arg5: memref<256x128xf32, #tpu.memory_space<vmem>>, %arg6: memref<256x128xf32, #tpu.memory_space<vmem>>, %arg7: memref<2x128xf32, #tpu.memory_space<vmem>>, %arg8: memref<3x200xf32, #tpu.memory_space<vmem>>, %arg9: memref<48x3xf32, #tpu.memory_space<vmem>>, %arg10: memref<1x8x128xf32, #tpu.memory_space<vmem>>, %arg11: memref<1x8x128xf32, #tpu.memory_space<vmem>>, %arg12: memref<1x8x128xf32, #tpu.memory_space<vmem>>, %arg13: memref<1x8x128xf32, #tpu.memory_space<vmem>>, %arg14: memref<1x8x128xf32, #tpu.memory_space<vmem>>) attributes {dimension_semantics = [#tpu.dimension_semantics<parallel>, #tpu.dimension_semantics<arbitrary>], iteration_bounds = array<i64: 2, 2>, scalar_prefetch = 0 : i64, scratch_operands = 0 : i64, tpu.core_type = #tpu.core_type<tc>, window_params = [{transform_indices = @transform_0, window_bounds = array<i64: 768, 128>}, {transform_indices = @transform_1, window_bounds = array<i64: 768, 128>}, {transform_indices = @transform_2, window_bounds = array<i64: 256, 128>}, {transform_indices = @transform_3, window_bounds = array<i64: 256, 128>}, {transform_indices = @transform_4, window_bounds = array<i64: 256, 128>}, {pipeline_mode = #tpu.pipeline_mode<synchronous>, transform_indices = @transform_5, window_bounds = array<i64: 2, 128>}, {pipeline_mode = #tpu.pipeline_mode<synchronous>, transform_indices = @transform_6, window_bounds = array<i64: 3, 200>}, {pipeline_mode = #tpu.pipeline_mode<synchronous>, transform_indices = @transform_7, window_bounds = array<i64: 48, 3>}, {transform_indices = @transform_8, window_bounds = array<i64: 1, 8, 128>}, {transform_indices = @transform_9, window_bounds = array<i64: 1, 8, 128>}, {transform_indices = @transform_10, window_bounds = array<i64: 1, 8, 128>}, {transform_indices = @transform_11, window_bounds = array<i64: 1, 8, 128>}, {transform_indices = @transform_12, window_bounds = array<i64: 1, 8, 128>}]} {
    %c0_i32 = arith.constant 0 : i32
    %0 = arith.cmpi eq, %arg1, %c0_i32 : i32
    %1 = arith.extui %0 : i1 to i32
    %c0_i32_0 = arith.constant 0 : i32
    %2 = arith.cmpi ne, %1, %c0_i32_0 : i32
    scf.if %2 {
      %cst_29 = arith.constant 0.000000e+00 : f32
      %30 = vector.broadcast %cst_29 : f32 to vector<1x8x128xf32>
      %c0_30 = arith.constant 0 : index
      %c0_31 = arith.constant 0 : index
      %c0_32 = arith.constant 0 : index
      %31 = vector.load %arg10[%c0_30, %c0_31, %c0_32] : memref<1x8x128xf32, #tpu.memory_space<vmem>>, vector<1x8x128xf32>
      tpu.vector_store %arg10[%c0_30, %c0_31, %c0_32], %30 {strides = array<i32>} : memref<1x8x128xf32, #tpu.memory_space<vmem>>, vector<1x8x128xf32>,
      %cst_33 = arith.constant 0.000000e+00 : f32
      %32 = vector.broadcast %cst_33 : f32 to vector<1x8x128xf32>
      %c0_34 = arith.constant 0 : index
      %c0_35 = arith.constant 0 : index
      %c0_36 = arith.constant 0 : index
      %33 = vector.load %arg11[%c0_34, %c0_35, %c0_36] : memref<1x8x128xf32, #tpu.memory_space<vmem>>, vector<1x8x128xf32>
      tpu.vector_store %arg11[%c0_34, %c0_35, %c0_36], %32 {strides = array<i32>} : memref<1x8x128xf32, #tpu.memory_space<vmem>>, vector<1x8x128xf32>,
      %cst_37 = arith.constant 0.000000e+00 : f32
      %34 = vector.broadcast %cst_37 : f32 to vector<1x8x128xf32>
      %c0_38 = arith.constant 0 : index
      %c0_39 = arith.constant 0 : index
      %c0_40 = arith.constant 0 : index
      %35 = vector.load %arg12[%c0_38, %c0_39, %c0_40] : memref<1x8x128xf32, #tpu.memory_space<vmem>>, vector<1x8x128xf32>
      tpu.vector_store %arg12[%c0_38, %c0_39, %c0_40], %34 {strides = array<i32>} : memref<1x8x128xf32, #tpu.memory_space<vmem>>, vector<1x8x128xf32>,
      %cst_41 = arith.constant 0.000000e+00 : f32
      %36 = vector.broadcast %cst_41 : f32 to vector<1x8x128xf32>
      %c0_42 = arith.constant 0 : index
      %c0_43 = arith.constant 0 : index
      %c0_44 = arith.constant 0 : index
      %37 = vector.load %arg13[%c0_42, %c0_43, %c0_44] : memref<1x8x128xf32, #tpu.memory_space<vmem>>, vector<1x8x128xf32>
      tpu.vector_store %arg13[%c0_42, %c0_43, %c0_44], %36 {strides = array<i32>} : memref<1x8x128xf32, #tpu.memory_space<vmem>>, vector<1x8x128xf32>,
      %cst_45 = arith.constant 0.000000e+00 : f32
      %38 = vector.broadcast %cst_45 : f32 to vector<1x8x128xf32>
      %c0_46 = arith.constant 0 : index
      %c0_47 = arith.constant 0 : index
      %c0_48 = arith.constant 0 : index
      %39 = vector.load %arg14[%c0_46, %c0_47, %c0_48] : memref<1x8x128xf32, #tpu.memory_space<vmem>>, vector<1x8x128xf32>
      tpu.vector_store %arg14[%c0_46, %c0_47, %c0_48], %38 {strides = array<i32>} : memref<1x8x128xf32, #tpu.memory_space<vmem>>, vector<1x8x128xf32>,
    } else {
    }
    %c0 = arith.constant 0 : index
    %c0_1 = arith.constant 0 : index
    %c0_2 = arith.constant 0 : index
    %3 = vector.load %arg10[%c0, %c0_1, %c0_2] : memref<1x8x128xf32, #tpu.memory_space<vmem>>, vector<1x8x128xf32>
    %c0_3 = arith.constant 0 : index
    %c0_4 = arith.constant 0 : index
    %4 = vector.load %arg2[%c0_3, %c0_4] : memref<768x128xf32, #tpu.memory_space<vmem>>, vector<768x128xf32>
    %c0_5 = arith.constant 0 : index
    %c0_6 = arith.constant 0 : index
    %5 = vector.load %arg3[%c0_5, %c0_6] : memref<768x128xf32, #tpu.memory_space<vmem>>, vector<768x128xf32>
    %6 = arith.subf %4, %5 : vector<768x128xf32>
    %7 = math.absf %6 : vector<768x128xf32>
    %8 = vector.shape_cast %7 : vector<768x128xf32> to vector<1x768x128xf32>
    %cst = arith.constant dense<0.000000e+00> : vector<1xf32>
    %9 = vector.multi_reduction <add>, %8, %cst [1, 2] : vector<1x768x128xf32> to vector<1xf32>
    %10 = vector.shape_cast %9 : vector<1xf32> to vector<1x1x1xf32>
    %11 = vector.extract %10[0, 0, 0] : f32 from vector<1x1x1xf32>
    %12 = vector.broadcast %11 : f32 to vector<1x8x128xf32>
    %13 = arith.addf %3, %12 : vector<1x8x128xf32>
    %c0_7 = arith.constant 0 : index
    %c0_8 = arith.constant 0 : index
    %c0_9 = arith.constant 0 : index
    %14 = vector.load %arg10[%c0_7, %c0_8, %c0_9] : memref<1x8x128xf32, #tpu.memory_space<vmem>>, vector<1x8x128xf32>
    tpu.vector_store %arg10[%c0_7, %c0_8, %c0_9], %13 {strides = array<i32>} : memref<1x8x128xf32, #tpu.memory_space<vmem>>, vector<1x8x128xf32>,
    %cst_10 = arith.constant 0.000000e+00 : f32
    %cst_11 = arith.constant 0.000000e+00 : f32
    %c0_i32_12 = arith.constant 0 : i32
    %c256_i32 = arith.constant 256 : i32
    %15 = arith.addi %c0_i32_12, %c256_i32 : i32
    %c1_i32 = arith.constant 1 : i32
    %16:2 = scf.for %arg15 = %c0_i32_12 to %15 step %c1_i32 iter_args(%arg16 = %cst_10, %arg17 = %cst_11) -> (f32, f32)  : i32 {
      %30 = arith.index_cast %arg15 : i32 to index
      %c0_29 = arith.constant 0 : index
      %31 = vector.load %arg4[%30, %c0_29] : memref<256x128xi32, #tpu.memory_space<vmem>>, vector<1x128xi32>
      %32 = arith.index_cast %arg15 : i32 to index
      %c0_30 = arith.constant 0 : index
      %33 = vector.load %arg5[%32, %c0_30] : memref<256x128xf32, #tpu.memory_space<vmem>>, vector<1x128xf32>
      %34 = arith.index_cast %arg15 : i32 to index
      %c0_31 = arith.constant 0 : index
      %35 = vector.load %arg6[%34, %c0_31] : memref<256x128xf32, #tpu.memory_space<vmem>>, vector<1x128xf32>
      %cst_32 = arith.constant 1.000000e-01 : f32
      %36 = vector.broadcast %cst_32 : f32 to vector<1x128xf32>
      %37 = arith.cmpf ogt, %35, %36 : vector<1x128xf32>
      %cst_33 = arith.constant 0.000000e+00 : f32
      %38 = vector.broadcast %cst_33 : f32 to vector<1x128xf32>
      %39 = arith.cmpf ogt, %33, %38 : vector<1x128xf32>
      %40 = arith.andi %37, %39 : vector<1x128xi1>
      %cst_34 = arith.constant 1.000000e+02 : f32
      %41 = vector.broadcast %cst_34 : f32 to vector<1x128xf32>
      %42 = arith.cmpf olt, %33, %41 : vector<1x128xf32>
      %43 = arith.andi %40, %42 : vector<1x128xi1>
      %c0_i32_35 = arith.constant 0 : i32
      %44 = vector.broadcast %c0_i32_35 : i32 to vector<1x128xi32>
      %45 = arith.cmpi sge, %31, %44 : vector<1x128xi32>
      %46 = arith.andi %43, %45 : vector<1x128xi1>
      %47 = arith.extui %46 : vector<1x128xi1> to vector<1x128xi32>
      %48 = arith.sitofp %47 : vector<1x128xi32> to vector<1x128xf32>
      %49 = arith.mulf %35, %48 : vector<1x128xf32>
      %cst_36 = arith.constant 0.000000e+00 : f32
      %50 = vector.broadcast %cst_36 : f32 to vector<1x128xf32>
      %c0_i32_37 = arith.constant 0 : i32
      %c2_i32 = arith.constant 2 : i32
      %51 = arith.addi %c0_i32_37, %c2_i32 : i32
      %c1_i32_38 = arith.constant 1 : i32
      %52 = scf.for %arg18 = %c0_i32_37 to %51 step %c1_i32_38 iter_args(%arg19 = %50) -> (vector<1x128xf32>)  : i32 {
        %c128_i32 = arith.constant 128 : i32
        %66 = arith.muli %arg18, %c128_i32 : i32
        %67 = tpu.iota {dimensions = array<i32: 0>} : vector<128x128xi32>
        %68 = vector.broadcast %66 : i32 to vector<128x128xi32>
        %69 = arith.addi %67, %68 : vector<128x128xi32>
        %70 = vector.broadcast %31 : vector<1x128xi32> to vector<128x128xi32>
        %71 = arith.cmpi eq, %69, %70 : vector<128x128xi32>
        %72 = arith.extui %71 : vector<128x128xi1> to vector<128x128xi32>
        %73 = arith.sitofp %72 : vector<128x128xi32> to vector<128x128xf32>
        %74 = arith.index_cast %arg18 : i32 to index
        %c0_42 = arith.constant 0 : index
        %75 = vector.load %arg7[%74, %c0_42] : memref<2x128xf32, #tpu.memory_space<vmem>>, vector<1x128xf32>
        %cst_43 = arith.constant dense<0.000000e+00> : vector<1x128xf32>
        %76 = tpu.matmul %75, %73, %cst_43 {dimension_numbers = #tpu.dot_dimension_numbers<[1], [0], [0], [1], [0, 0, 1, 1], [], []>} : vector<1x128xf32>, vector<128x128xf32>, vector<1x128xf32> -> vector<1x128xf32>
        %77 = arith.addf %arg19, %76 : vector<1x128xf32>
        scf.yield %77 : vector<1x128xf32>
      }
      %c2_i32_39 = arith.constant 2 : i32
      %53 = arith.subf %52, %33 : vector<1x128xf32>
      %54 = math.absf %53 : vector<1x128xf32>
      %55 = arith.mulf %49, %54 : vector<1x128xf32>
      %56 = vector.shape_cast %55 : vector<1x128xf32> to vector<1x1x128xf32>
      %cst_40 = arith.constant dense<0.000000e+00> : vector<1xf32>
      %57 = vector.multi_reduction <add>, %56, %cst_40 [1, 2] : vector<1x1x128xf32> to vector<1xf32>
      %58 = vector.shape_cast %57 : vector<1xf32> to vector<1x1x1xf32>
      %59 = vector.extract %58[0, 0, 0] : f32 from vector<1x1x1xf32>
      %60 = arith.addf %arg16, %59 : f32
      %61 = vector.shape_cast %49 : vector<1x128xf32> to vector<1x1x128xf32>
      %cst_41 = arith.constant dense<0.000000e+00> : vector<1xf32>
      %62 = vector.multi_reduction <add>, %61, %cst_41 [1, 2] : vector<1x1x128xf32> to vector<1xf32>
      %63 = vector.shape_cast %62 : vector<1xf32> to vector<1x1x1xf32>
      %64 = vector.extract %63[0, 0, 0] : f32 from vector<1x1x1xf32>
      %65 = arith.addf %arg17, %64 : f32
      scf.yield %60, %65 : f32, f32
    }
    %c256_i32_13 = arith.constant 256 : i32
    %c0_14 = arith.constant 0 : index
    %c0_15 = arith.constant 0 : index
    %c0_16 = arith.constant 0 : index
    %17 = vector.load %arg11[%c0_14, %c0_15, %c0_16] : memref<1x8x128xf32, #tpu.memory_space<vmem>>, vector<1x8x128xf32>
    %18 = vector.broadcast %16#0 : f32 to vector<1x8x128xf32>
    %19 = arith.addf %17, %18 : vector<1x8x128xf32>
    %c0_17 = arith.constant 0 : index
    %c0_18 = arith.constant 0 : index
    %c0_19 = arith.constant 0 : index
    %20 = vector.load %arg11[%c0_17, %c0_18, %c0_19] : memref<1x8x128xf32, #tpu.memory_space<vmem>>, vector<1x8x128xf32>
    tpu.vector_store %arg11[%c0_17, %c0_18, %c0_19], %19 {strides = array<i32>} : memref<1x8x128xf32, #tpu.memory_space<vmem>>, vector<1x8x128xf32>,
    %c0_20 = arith.constant 0 : index
    %c0_21 = arith.constant 0 : index
    %c0_22 = arith.constant 0 : index
    %21 = vector.load %arg12[%c0_20, %c0_21, %c0_22] : memref<1x8x128xf32, #tpu.memory_space<vmem>>, vector<1x8x128xf32>
    %22 = vector.broadcast %16#1 : f32 to vector<1x8x128xf32>
    %23 = arith.addf %21, %22 : vector<1x8x128xf32>
    %c0_23 = arith.constant 0 : index
    %c0_24 = arith.constant 0 : index
    %c0_25 = arith.constant 0 : index
    %24 = vector.load %arg12[%c0_23, %c0_24, %c0_25] : memref<1x8x128xf32, #tpu.memory_space<vmem>>, vector<1x8x128xf32>
    tpu.vector_store %arg12[%c0_23, %c0_24, %c0_25], %23 {strides = array<i32>} : memref<1x8x128xf32, #tpu.memory_space<vmem>>, vector<1x8x128xf32>,
    %c0_i32_26 = arith.constant 0 : i32
    %25 = arith.cmpi eq, %arg0, %c0_i32_26 : i32
    %c0_i32_27 = arith.constant 0 : i32
    %26 = arith.cmpi eq, %arg1, %c0_i32_27 : i32
    %27 = arith.andi %25, %26 : i1
    %28 = arith.extui %27 : i1 to i32
    %c0_i32_28 = arith.constant 0 : i32
    %29 = arith.cmpi ne, %28, %c0_i32_28 : i32
    scf.if %29 {
      %c0_29 = arith.constant 0 : index
      %c0_30 = arith.constant 0 : index
      %30 = vector.load %arg8[%c0_29, %c0_30] : memref<3x200xf32, #tpu.memory_space<vmem>>, vector<3x200xf32>
      %c0_31 = arith.constant 0 : index
      %c0_32 = arith.constant 0 : index
      %31 = vector.load %arg9[%c0_31, %c0_32] : memref<48x3xf32, #tpu.memory_space<vmem>>, vector<48x3xf32>
      %32 = vector.extract_strided_slice %31 {offsets = [0, 0], sizes = [48, 1], strides = [1, 1]} : vector<48x3xf32> to vector<48x1xf32>
      %33 = vector.extract_strided_slice %30 {offsets = [0, 0], sizes = [1, 200], strides = [1, 1]} : vector<3x200xf32> to vector<1x200xf32>
      %34 = vector.broadcast %32 : vector<48x1xf32> to vector<48x200xf32>
      %35 = vector.broadcast %33 : vector<1x200xf32> to vector<48x200xf32>
      %36 = arith.subf %34, %35 : vector<48x200xf32>
      %37 = arith.mulf %36, %36 : vector<48x200xf32>
      %38 = vector.extract_strided_slice %31 {offsets = [0, 1], sizes = [48, 1], strides = [1, 1]} : vector<48x3xf32> to vector<48x1xf32>
      %39 = vector.extract_strided_slice %30 {offsets = [1, 0], sizes = [1, 200], strides = [1, 1]} : vector<3x200xf32> to vector<1x200xf32>
      %40 = vector.broadcast %38 : vector<48x1xf32> to vector<48x200xf32>
      %41 = vector.broadcast %39 : vector<1x200xf32> to vector<48x200xf32>
      %42 = arith.subf %40, %41 : vector<48x200xf32>
      %43 = arith.mulf %42, %42 : vector<48x200xf32>
      %44 = arith.addf %37, %43 : vector<48x200xf32>
      %45 = vector.extract_strided_slice %31 {offsets = [0, 2], sizes = [48, 1], strides = [1, 1]} : vector<48x3xf32> to vector<48x1xf32>
      %46 = vector.extract_strided_slice %30 {offsets = [2, 0], sizes = [1, 200], strides = [1, 1]} : vector<3x200xf32> to vector<1x200xf32>
      %47 = vector.broadcast %45 : vector<48x1xf32> to vector<48x200xf32>
      %48 = vector.broadcast %46 : vector<1x200xf32> to vector<48x200xf32>
      %49 = arith.subf %47, %48 : vector<48x200xf32>
      %50 = arith.mulf %49, %49 : vector<48x200xf32>
      %51 = arith.addf %44, %50 : vector<48x200xf32>
      %cst_33 = arith.constant dense<0x7F800000> : vector<48xf32>
      %52 = vector.multi_reduction <minimumf>, %51, %cst_33 [1] : vector<48x200xf32> to vector<48xf32>
      %53 = vector.shape_cast %52 : vector<48xf32> to vector<48x1xf32>
      %cst_34 = arith.constant 1.000000e+00 : f32
      %54 = vector.broadcast %cst_34 : f32 to vector<48x1xf32>
      %55 = arith.cmpf olt, %53, %54 : vector<48x1xf32>
      %56 = arith.extui %55 : vector<48x1xi1> to vector<48x1xi32>
      %57 = arith.sitofp %56 : vector<48x1xi32> to vector<48x1xf32>
      %c0_35 = arith.constant 0 : index
      %c0_36 = arith.constant 0 : index
      %c0_37 = arith.constant 0 : index
      %58 = vector.load %arg13[%c0_35, %c0_36, %c0_37] : memref<1x8x128xf32, #tpu.memory_space<vmem>>, vector<1x8x128xf32>
      %59 = arith.mulf %53, %57 : vector<48x1xf32>
      %60 = vector.shape_cast %59 : vector<48x1xf32> to vector<1x48x1xf32>
      %cst_38 = arith.constant dense<0.000000e+00> : vector<1xf32>
      %61 = vector.multi_reduction <add>, %60, %cst_38 [1, 2] : vector<1x48x1xf32> to vector<1xf32>
      %62 = vector.shape_cast %61 : vector<1xf32> to vector<1x1x1xf32>
      %63 = vector.extract %62[0, 0, 0] : f32 from vector<1x1x1xf32>
      %64 = vector.broadcast %63 : f32 to vector<1x8x128xf32>
      %65 = arith.addf %58, %64 : vector<1x8x128xf32>
      %c0_39 = arith.constant 0 : index
      %c0_40 = arith.constant 0 : index
      %c0_41 = arith.constant 0 : index
      %66 = vector.load %arg13[%c0_39, %c0_40, %c0_41] : memref<1x8x128xf32, #tpu.memory_space<vmem>>, vector<1x8x128xf32>
      tpu.vector_store %arg13[%c0_39, %c0_40, %c0_41], %65 {strides = array<i32>} : memref<1x8x128xf32, #tpu.memory_space<vmem>>, vector<1x8x128xf32>,
      %c0_42 = arith.constant 0 : index
      %c0_43 = arith.constant 0 : index
      %c0_44 = arith.constant 0 : index
      %67 = vector.load %arg14[%c0_42, %c0_43, %c0_44] : memref<1x8x128xf32, #tpu.memory_space<vmem>>, vector<1x8x128xf32>
      %68 = vector.shape_cast %57 : vector<48x1xf32> to vector<1x48x1xf32>
      %cst_45 = arith.constant dense<0.000000e+00> : vector<1xf32>
      %69 = vector.multi_reduction <add>, %68, %cst_45 [1, 2] : vector<1x48x1xf32> to vector<1xf32>
      %70 = vector.shape_cast %69 : vector<1xf32> to vector<1x1x1xf32>
      %71 = vector.extract %70[0, 0, 0] : f32 from vector<1x1x1xf32>
      %72 = vector.broadcast %71 : f32 to vector<1x8x128xf32>
      %73 = arith.addf %67, %72 : vector<1x8x128xf32>
      %c0_46 = arith.constant 0 : index
      %c0_47 = arith.constant 0 : index
      %c0_48 = arith.constant 0 : index
      %74 = vector.load %arg14[%c0_46, %c0_47, %c0_48] : memref<1x8x128xf32, #tpu.memory_space<vmem>>, vector<1x8x128xf32>
      tpu.vector_store %arg14[%c0_46, %c0_47, %c0_48], %73 {strides = array<i32>} : memref<1x8x128xf32, #tpu.memory_space<vmem>>, vector<1x8x128xf32>,
    } else {
    }
    return
  }
  func.func @transform_0(%arg0: i32, %arg1: i32) -> (i32, i32) {
    %c2_i32 = arith.constant 2 : i32
    %0 = arith.muli %arg0, %c2_i32 : i32
    %1 = arith.addi %0, %arg1 : i32
    %c0_i32 = arith.constant 0 : i32
    %c0_i32_0 = arith.constant 0 : i32
    return %1, %c0_i32 : i32, i32
  }
  func.func @transform_1(%arg0: i32, %arg1: i32) -> (i32, i32) {
    %c2_i32 = arith.constant 2 : i32
    %0 = arith.muli %arg0, %c2_i32 : i32
    %1 = arith.addi %0, %arg1 : i32
    %c0_i32 = arith.constant 0 : i32
    %c0_i32_0 = arith.constant 0 : i32
    return %1, %c0_i32 : i32, i32
  }
  func.func @transform_2(%arg0: i32, %arg1: i32) -> (i32, i32) {
    %c2_i32 = arith.constant 2 : i32
    %0 = arith.muli %arg0, %c2_i32 : i32
    %1 = arith.addi %0, %arg1 : i32
    %c0_i32 = arith.constant 0 : i32
    %c0_i32_0 = arith.constant 0 : i32
    return %1, %c0_i32 : i32, i32
  }
  func.func @transform_3(%arg0: i32, %arg1: i32) -> (i32, i32) {
    %c2_i32 = arith.constant 2 : i32
    %0 = arith.muli %arg0, %c2_i32 : i32
    %1 = arith.addi %0, %arg1 : i32
    %c0_i32 = arith.constant 0 : i32
    %c0_i32_0 = arith.constant 0 : i32
    return %1, %c0_i32 : i32, i32
  }
  func.func @transform_4(%arg0: i32, %arg1: i32) -> (i32, i32) {
    %c2_i32 = arith.constant 2 : i32
    %0 = arith.muli %arg0, %c2_i32 : i32
    %1 = arith.addi %0, %arg1 : i32
    %c0_i32 = arith.constant 0 : i32
    %c0_i32_0 = arith.constant 0 : i32
    return %1, %c0_i32 : i32, i32
  }
  func.func @transform_5(%arg0: i32, %arg1: i32) -> (i32, i32) {
    %c0_i32 = arith.constant 0 : i32
    %c0_i32_0 = arith.constant 0 : i32
    %c0_i32_1 = arith.constant 0 : i32
    return %c0_i32, %c0_i32_0 : i32, i32
  }
  func.func @transform_6(%arg0: i32, %arg1: i32) -> (i32, i32) {
    %c0_i32 = arith.constant 0 : i32
    %c0_i32_0 = arith.constant 0 : i32
    %c0_i32_1 = arith.constant 0 : i32
    return %c0_i32, %c0_i32_0 : i32, i32
  }
  func.func @transform_7(%arg0: i32, %arg1: i32) -> (i32, i32) {
    %c0_i32 = arith.constant 0 : i32
    %c0_i32_0 = arith.constant 0 : i32
    %c0_i32_1 = arith.constant 0 : i32
    return %c0_i32, %c0_i32_0 : i32, i32
  }
  func.func @transform_8(%arg0: i32, %arg1: i32) -> (i32, i32, i32) {
    %c0_i32 = arith.constant 0 : i32
    %c0_i32_0 = arith.constant 0 : i32
    %c0_i32_1 = arith.constant 0 : i32
    return %arg0, %c0_i32, %c0_i32_0 : i32, i32, i32
  }
  func.func @transform_9(%arg0: i32, %arg1: i32) -> (i32, i32, i32) {
    %c0_i32 = arith.constant 0 : i32
    %c0_i32_0 = arith.constant 0 : i32
    %c0_i32_1 = arith.constant 0 : i32
    return %arg0, %c0_i32, %c0_i32_0 : i32, i32, i32
  }
  func.func @transform_10(%arg0: i32, %arg1: i32) -> (i32, i32, i32) {
    %c0_i32 = arith.constant 0 : i32
    %c0_i32_0 = arith.constant 0 : i32
    %c0_i32_1 = arith.constant 0 : i32
    return %arg0, %c0_i32, %c0_i32_0 : i32, i32, i32
  }
  func.func @transform_11(%arg0: i32, %arg1: i32) -> (i32, i32, i32) {
    %c0_i32 = arith.constant 0 : i32
    %c0_i32_0 = arith.constant 0 : i32
    %c0_i32_1 = arith.constant 0 : i32
    return %arg0, %c0_i32, %c0_i32_0 : i32, i32, i32
  }
  func.func @transform_12(%arg0: i32, %arg1: i32) -> (i32, i32, i32) {
    %c0_i32 = arith.constant 0 : i32
    %c0_i32_0 = arith.constant 0 : i32
    %c0_i32_1 = arith.constant 0 : i32
    return %arg0, %c0_i32, %c0_i32_0 : i32, i32, i32
  }
}

</mosaic_0001>

<llo_original>
// kernel: mono4dgs_loss.1
$region0: #{mono4dgs_loss.1}
  #allocation0 [shape = 'u32[]', space=smem, size = 0x4, offset = 0x4, fixed_abs, tag = 'smem constant byte address 0x4 - core index']
  #allocation1 [shape = 'u32[144,128]{1,0:T(1,128)}', space=vmem, size = 0x12000, scoped, tag = 'internal scratch']
  %s0 = inlined_call_operand.hbm [shape: f32[3072,128], index: 0, kind: input, shape index: {}]
  %s1 = inlined_call_operand.hbm [shape: f32[3072,128], index: 1, kind: input, shape index: {}]
  %s2 = inlined_call_operand.hbm [shape: s32[1024,128], index: 2, kind: input, shape index: {}]
  %s3 = inlined_call_operand.hbm [shape: f32[1024,128], index: 3, kind: input, shape index: {}]
  %s4 = inlined_call_operand.hbm [shape: f32[1024,128], index: 4, kind: input, shape index: {}]
  %s5 = inlined_call_operand.vmem [shape: f32[2,128], index: 5, kind: input, shape index: {}]
  %s6 = inlined_call_operand.hbm [shape: f32[3,200], index: 6, kind: input, shape index: {}]
  %s7 = inlined_call_operand.vmem [shape: f32[48,3], index: 7, kind: input, shape index: {}]
  %s8 = inlined_call_operand.vmem [shape: f32[2,8,128], index: 8, kind: output, shape index: {0}]
  %s9 = inlined_call_operand.vmem [shape: f32[2,8,128], index: 9, kind: output, shape index: {1}]
  %s10 = inlined_call_operand.vmem [shape: f32[2,8,128], index: 10, kind: output, shape index: {2}]
  %s11 = inlined_call_operand.vmem [shape: f32[2,8,128], index: 11, kind: output, shape index: {3}]
  %s12 = inlined_call_operand.vmem [shape: f32[2,8,128], index: 12, kind: output, shape index: {4}]
  %13 = xla_tuple %s8, %s9, %s10, %s11, %s12
  %s14 = sld [smem:[#allocation0]]
  $region143: #{mono4dgs_loss.1} parent=0
    _
  %s16 = ssub.s32 1, %s14
  %s17 = scalar_select 0, %s16, %s14
  $region1: #{mono4dgs_loss.1} parent=0
    #allocation2 [shape = 'u8[786432]{0}', space=vmem, size = 0xc0000, scoped, tag = 'input window, operand 0']
    #allocation3 [shape = 's32[2]{0}', space=sflag, size = 0x8, scoped, tag = 'scoped memory for mono4dgs_loss.1']
    #allocation4 [shape = 'u8[786432]{0}', space=vmem, size = 0xc0000, scoped, tag = 'input window, operand 1']
    #allocation5 [shape = 's32[2]{0}', space=sflag, size = 0x8, scoped, tag = 'scoped memory for mono4dgs_loss.1']
    #allocation6 [shape = 'u8[262144]{0}', space=vmem, size = 0x40000, scoped, tag = 'input window, operand 2']
    #allocation7 [shape = 'u8[262144]{0}', space=vmem, size = 0x40000, scoped, tag = 'input window, operand 3']
    #allocation8 [shape = 's32[2]{0}', space=sflag, size = 0x8, scoped, tag = 'scoped memory for mono4dgs_loss.1']
    #allocation9 [shape = 'u8[262144]{0}', space=vmem, size = 0x40000, scoped, tag = 'input window, operand 4']
    #allocation10 [shape = 'u8[4096]{0}', space=vmem, size = 0x1000, scoped, tag = 'input window, operand 6, single buffered']
    #allocation11 [shape = 's32[1]{0}', space=sflag, size = 0x4, scoped, tag = 'scoped memory for mono4dgs_loss.1']
    %18 = vsyncpa [#allocation3], 0
    %s19 = scalar_lea.sflag [#allocation3], 1
    %20 = vsyncpa %s19, 0
    %21 = vsyncpa [#allocation5], 0
    %s22 = scalar_lea.sflag [#allocation5], 1
    %23 = vsyncpa %s22, 0
    %24 = vsyncpa [#allocation8], 0
    %s25 = scalar_lea.sflag [#allocation8], 1
    %26 = vsyncpa %s25, 0
    %27 = vsyncpa [#allocation11], 0
    loop: start=0, step=1, limit=6
    $region2: #{mono4dgs_loss.1} parent=1 // loop_pre_header
      _
    $region3: #{mono4dgs_loss.1} parent=1 // loop_header
      %s29 = sphi 0, %s33
      %p30 = scmp.ge.s32.totalorder %s29, 6
      %s36 = sphi 0, %s48
      %s37 = sphi 0, %s44
      %s38 = sphi 0, %s36
      %s39 = sphi 0, %s37
      %s40 = sphi 0, %s38
      %s41 = sphi 0, %s39
      %s55 = sphi 0, %s57
      %s58 = sphi 0, %s55
      %s59 = sphi 0, %s58
      %s75 = sphi 0, %s59
      %s85 = sphi 0, %s87
      %s88 = sphi 0, %s85
      %s89 = sphi 0, %s88
      %s105 = sphi 0, %s89
      %s115 = sphi 0, %s117
      %s118 = sphi 0, %s115
      %s119 = sphi 0, %s118
      %s135 = sphi 0, %s119
      %s145 = sphi 0, %s147
      %s148 = sphi 0, %s145
      %s149 = sphi 0, %s148
      %s165 = sphi 0, %s149
      %s175 = sphi 0, %s177
      %s178 = sphi 0, %s175
      %s179 = sphi 0, %s178
      %s195 = sphi 0, %s179
      %s199 = sphi 0, %s199
      %s201 = sphi 0, %s199
      %s202 = sphi 0, %s201
      %s216 = sphi 0, %s202
      %s220 = sphi 0, %s220
      %s222 = sphi 0, %s220
      %s223 = sphi 0, %s222
      %s237 = sphi 0, %s223
      %s241 = sphi 0, %s241
      %s243 = sphi 0, %s241
      %s244 = sphi 0, %s243
      %s258 = sphi 0, %s244
      %s264 = sphi 0, %s266
      %s267 = sphi 0, %s264
      %s268 = sphi 0, %s267
      %s284 = sphi 0, %s268
      %s290 = sphi 0, %s292
      %s293 = sphi 0, %s290
      %s294 = sphi 0, %s293
      %s310 = sphi 0, %s294
      %s316 = sphi 0, %s318
      %s319 = sphi 0, %s316
      %s320 = sphi 0, %s319
      %s336 = sphi 0, %s320
      %s342 = sphi 0, %s344
      %s345 = sphi 0, %s342
      %s346 = sphi 0, %s345
      %s362 = sphi 0, %s346
      %s368 = sphi 0, %s370
      %s371 = sphi 0, %s368
      %s372 = sphi 0, %s371
      %s388 = sphi 0, %s372
    $region4: #{mono4dgs_loss.1} parent=1 // loop_header_branch
      %32 = sbr.rel (%p30) target = $region8
    $region5: #{mono4dgs_loss.1} parent=1 // loop_body
      %s34 = ssub.s32 %s29, 1
      %s35 = ssub.s32 %s29, 2
      %s42 = sadd.s32 1, %s37
      %p43 = scmp.ge.s32.totalorder %s42, 2
      %s44 = scalar_select %p43, 0, %s42
      %s45 = sadd.s32 1, %s36
      %s46 = scalar_select %p43, %s45, %s36
      %p47 = scmp.ge.s32.totalorder %s46, 2
      %s48 = scalar_select %p47, 0, %s46
      %s49 = smul.u32 %s36, 2
      %s50 = sadd.s32 %s49, %s37
      %s51 = smul.u32 %s48, 2
      %s52 = sadd.s32 %s51, %s44
      %s53 = ssub.s32 %s50, %s52
      %p54 = scmp.eq.s32.totalorder %s53, 0
      %s56 = sadd.s32 %s55, 1
      %s57 = scalar_select %p54, %s55, %s56
      %p60 = pneg %p54
      %p61 = scmp.eq.s32.totalorder %s29, 3
      %p62 = por %p60, %p61
      %p63 = scmp.ne.s32.totalorder %s55, %s58
      %p64 = scmp.eq.s32.totalorder %s29, 0
      %p65 = por %p63, %p64
      %p66 = scmp.ne.s32.totalorder %s55, %s58
      %p67 = scmp.eq.s32.totalorder %s34, 3
      %p68 = por %p66, %p67
      %p69 = scmp.ne.s32.totalorder %s58, %s59
      %p70 = scmp.eq.s32.totalorder %s34, 0
      %p71 = por %p69, %p70
      %p72 = scmp.ne.s32.totalorder %s58, %s59
      %p73 = scmp.eq.s32.totalorder %s35, 3
      %p74 = por %p72, %p73
      %p76 = scmp.ne.s32.totalorder %s59, %s75
      %p77 = scmp.eq.s32.totalorder %s35, 0
      %p78 = por %p76, %p77
      %s79 = smul.u32 %s36, 2
      %s80 = sadd.s32 %s79, %s37
      %s81 = smul.u32 %s48, 2
      %s82 = sadd.s32 %s81, %s44
      %s83 = ssub.s32 %s80, %s82
      %p84 = scmp.eq.s32.totalorder %s83, 0
      %s86 = sadd.s32 %s85, 1
      %s87 = scalar_select %p84, %s85, %s86
      %p90 = pneg %p84
      %p91 = scmp.eq.s32.totalorder %s29, 3
      %p92 = por %p90, %p91
      %p93 = scmp.ne.s32.totalorder %s85, %s88
      %p94 = scmp.eq.s32.totalorder %s29, 0
      %p95 = por %p93, %p94
      %p96 = scmp.ne.s32.totalorder %s85, %s88
      %p97 = scmp.eq.s32.totalorder %s34, 3
      %p98 = por %p96, %p97
      %p99 = scmp.ne.s32.totalorder %s88, %s89
      %p100 = scmp.eq.s32.totalorder %s34, 0
      %p101 = por %p99, %p100
      %p102 = scmp.ne.s32.totalorder %s88, %s89
      %p103 = scmp.eq.s32.totalorder %s35, 3
      %p104 = por %p102, %p103
      %p106 = scmp.ne.s32.totalorder %s89, %s105
      %p107 = scmp.eq.s32.totalorder %s35, 0
      %p108 = por %p106, %p107
      %s109 = smul.u32 %s36, 2
      %s110 = sadd.s32 %s109, %s37
      %s111 = smul.u32 %s48, 2
      %s112 = sadd.s32 %s111, %s44
      %s113 = ssub.s32 %s110, %s112
      %p114 = scmp.eq.s32.totalorder %s113, 0
      %s116 = sadd.s32 %s115, 1
      %s117 = scalar_select %p114, %s115, %s116
      %p120 = pneg %p114
      %p121 = scmp.eq.s32.totalorder %s29, 3
      %p122 = por %p120, %p121
      %p123 = scmp.ne.s32.totalorder %s115, %s118
      %p124 = scmp.eq.s32.totalorder %s29, 0
      %p125 = por %p123, %p124
      %p126 = scmp.ne.s32.totalorder %s115, %s118
      %p127 = scmp.eq.s32.totalorder %s34, 3
      %p128 = por %p126, %p127
      %p129 = scmp.ne.s32.totalorder %s118, %s119
      %p130 = scmp.eq.s32.totalorder %s34, 0
      %p131 = por %p129, %p130
      %p132 = scmp.ne.s32.totalorder %s118, %s119
      %p133 = scmp.eq.s32.totalorder %s35, 3
      %p134 = por %p132, %p133
      %p136 = scmp.ne.s32.totalorder %s119, %s135
      %p137 = scmp.eq.s32.totalorder %s35, 0
      %p138 = por %p136, %p137
      %s139 = smul.u32 %s36, 2
      %s140 = sadd.s32 %s139, %s37
      %s141 = smul.u32 %s48, 2
      %s142 = sadd.s32 %s141, %s44
      %s143 = ssub.s32 %s140, %s142
      %p144 = scmp.eq.s32.totalorder %s143, 0
      %s146 = sadd.s32 %s145, 1
      %s147 = scalar_select %p144, %s145, %s146
      %p150 = pneg %p144
      %p151 = scmp.eq.s32.totalorder %s29, 3
      %p152 = por %p150, %p151
      %p153 = scmp.ne.s32.totalorder %s145, %s148
      %p154 = scmp.eq.s32.totalorder %s29, 0
      %p155 = por %p153, %p154
      %p156 = scmp.ne.s32.totalorder %s145, %s148
      %p157 = scmp.eq.s32.totalorder %s34, 3
      %p158 = por %p156, %p157
      %p159 = scmp.ne.s32.totalorder %s148, %s149
      %p160 = scmp.eq.s32.totalorder %s34, 0
      %p161 = por %p159, %p160
      %p162 = scmp.ne.s32.totalorder %s148, %s149
      %p163 = scmp.eq.s32.totalorder %s35, 3
      %p164 = por %p162, %p163
      %p166 = scmp.ne.s32.totalorder %s149, %s165
      %p167 = scmp.eq.s32.totalorder %s35, 0
      %p168 = por %p166, %p167
      %s169 = smul.u32 %s36, 2
      %s170 = sadd.s32 %s169, %s37
      %s171 = smul.u32 %s48, 2
      %s172 = sadd.s32 %s171, %s44
      %s173 = ssub.s32 %s170, %s172
      %p174 = scmp.eq.s32.totalorder %s173, 0
      %s176 = sadd.s32 %s175, 1
      %s177 = scalar_select %p174, %s175, %s176
      %p180 = pneg %p174
      %p181 = scmp.eq.s32.totalorder %s29, 3
      %p182 = por %p180, %p181
      %p183 = scmp.ne.s32.totalorder %s175, %s178
      %p184 = scmp.eq.s32.totalorder %s29, 0
      %p185 = por %p183, %p184
      %p186 = scmp.ne.s32.totalorder %s175, %s178
      %p187 = scmp.eq.s32.totalorder %s34, 3
      %p188 = por %p186, %p187
      %p189 = scmp.ne.s32.totalorder %s178, %s179
      %p190 = scmp.eq.s32.totalorder %s34, 0
      %p191 = por %p189, %p190
      %p192 = scmp.ne.s32.totalorder %s178, %s179
      %p193 = scmp.eq.s32.totalorder %s35, 3
      %p194 = por %p192, %p193
      %p196 = scmp.ne.s32.totalorder %s179, %s195
      %p197 = scmp.eq.s32.totalorder %s35, 0
      %p198 = por %p196, %p197
      %s200 = sadd.s32 %s199, 1
      %p203 = scmp.eq.s32.totalorder %s29, 3
      %p204 = scmp.ne.s32.totalorder %s199, %s201
      %p205 = scmp.eq.s32.totalorder %s29, 0
      %p206 = por %p204, %p205
      %p207 = scmp.ne.s32.totalorder %s199, %s201
      %p208 = scmp.eq.s32.totalorder %s34, 3
      %p209 = por %p207, %p208
      %p210 = scmp.ne.s32.totalorder %s201, %s202
      %p211 = scmp.eq.s32.totalorder %s34, 0
      %p212 = por %p210, %p211
      %p213 = scmp.ne.s32.totalorder %s201, %s202
      %p214 = scmp.eq.s32.totalorder %s35, 3
      %p215 = por %p213, %p214
      %p217 = scmp.ne.s32.totalorder %s202, %s216
      %p218 = scmp.eq.s32.totalorder %s35, 0
      %p219 = por %p217, %p218
      %s221 = sadd.s32 %s220, 1
      %p224 = scmp.eq.s32.totalorder %s29, 3
      %p225 = scmp.ne.s32.totalorder %s220, %s222
      %p226 = scmp.eq.s32.totalorder %s29, 0
      %p227 = por %p225, %p226
      %p228 = scmp.ne.s32.totalorder %s220, %s222
      %p229 = scmp.eq.s32.totalorder %s34, 3
      %p230 = por %p228, %p229
      %p231 = scmp.ne.s32.totalorder %s222, %s223
      %p232 = scmp.eq.s32.totalorder %s34, 0
      %p233 = por %p231, %p232
      %p234 = scmp.ne.s32.totalorder %s222, %s223
      %p235 = scmp.eq.s32.totalorder %s35, 3
      %p236 = por %p234, %p235
      %p238 = scmp.ne.s32.totalorder %s223, %s237
      %p239 = scmp.eq.s32.totalorder %s35, 0
      %p240 = por %p238, %p239
      %s242 = sadd.s32 %s241, 1
      %p245 = scmp.eq.s32.totalorder %s29, 3
      %p246 = scmp.ne.s32.totalorder %s241, %s243
      %p247 = scmp.eq.s32.totalorder %s29, 0
      %p248 = por %p246, %p247
      %p249 = scmp.ne.s32.totalorder %s241, %s243
      %p250 = scmp.eq.s32.totalorder %s34, 3
      %p251 = por %p249, %p250
      %p252 = scmp.ne.s32.totalorder %s243, %s244
      %p253 = scmp.eq.s32.totalorder %s34, 0
      %p254 = por %p252, %p253
      %p255 = scmp.ne.s32.totalorder %s243, %s244
      %p256 = scmp.eq.s32.totalorder %s35, 3
      %p257 = por %p255, %p256
      %p259 = scmp.ne.s32.totalorder %s244, %s258
      %p260 = scmp.eq.s32.totalorder %s35, 0
      %p261 = por %p259, %p260
      %s262 = ssub.s32 %s36, %s48
      %p263 = scmp.eq.s32.totalorder %s262, 0
      %s265 = sadd.s32 %s264, 1
      %s266 = scalar_select %p263, %s264, %s265
      %p269 = pneg %p263
      %p270 = scmp.eq.s32.totalorder %s29, 3
      %p271 = por %p269, %p270
      %p272 = scmp.ne.s32.totalorder %s264, %s267
      %p273 = scmp.eq.s32.totalorder %s29, 0
      %p274 = por %p272, %p273
      %p275 = scmp.ne.s32.totalorder %s264, %s267
      %p276 = scmp.eq.s32.totalorder %s34, 3
      %p277 = por %p275, %p276
      %p278 = scmp.ne.s32.totalorder %s267, %s268
      %p279 = scmp.eq.s32.totalorder %s34, 0
      %p280 = por %p278, %p279
      %p281 = scmp.ne.s32.totalorder %s267, %s268
      %p282 = scmp.eq.s32.totalorder %s35, 3
      %p283 = por %p281, %p282
      %p285 = scmp.ne.s32.totalorder %s268, %s284
      %p286 = scmp.eq.s32.totalorder %s35, 0
      %p287 = por %p285, %p286
      %s288 = ssub.s32 %s36, %s48
      %p289 = scmp.eq.s32.totalorder %s288, 0
      %s291 = sadd.s32 %s290, 1
      %s292 = scalar_select %p289, %s290, %s291
      %p295 = pneg %p289
      %p296 = scmp.eq.s32.totalorder %s29, 3
      %p297 = por %p295, %p296
      %p298 = scmp.ne.s32.totalorder %s290, %s293
      %p299 = scmp.eq.s32.totalorder %s29, 0
      %p300 = por %p298, %p299
      %p301 = scmp.ne.s32.totalorder %s290, %s293
      %p302 = scmp.eq.s32.totalorder %s34, 3
      %p303 = por %p301, %p302
      %p304 = scmp.ne.s32.totalorder %s293, %s294
      %p305 = scmp.eq.s32.totalorder %s34, 0
      %p306 = por %p304, %p305
      %p307 = scmp.ne.s32.totalorder %s293, %s294
      %p308 = scmp.eq.s32.totalorder %s35, 3
      %p309 = por %p307, %p308
      %p311 = scmp.ne.s32.totalorder %s294, %s310
      %p312 = scmp.eq.s32.totalorder %s35, 0
      %p313 = por %p311, %p312
      %s314 = ssub.s32 %s36, %s48
      %p315 = scmp.eq.s32.totalorder %s314, 0
      %s317 = sadd.s32 %s316, 1
      %s318 = scalar_select %p315, %s316, %s317
      %p321 = pneg %p315
      %p322 = scmp.eq.s32.totalorder %s29, 3
      %p323 = por %p321, %p322
      %p324 = scmp.ne.s32.totalorder %s316, %s319
      %p325 = scmp.eq.s32.totalorder %s29, 0
      %p326 = por %p324, %p325
      %p327 = scmp.ne.s32.totalorder %s316, %s319
      %p328 = scmp.eq.s32.totalorder %s34, 3
      %p329 = por %p327, %p328
      %p330 = scmp.ne.s32.totalorder %s319, %s320
      %p331 = scmp.eq.s32.totalorder %s34, 0
      %p332 = por %p330, %p331
      %p333 = scmp.ne.s32.totalorder %s319, %s320
      %p334 = scmp.eq.s32.totalorder %s35, 3
      %p335 = por %p333, %p334
      %p337 = scmp.ne.s32.totalorder %s320, %s336
      %p338 = scmp.eq.s32.totalorder %s35, 0
      %p339 = por %p337, %p338
      %s340 = ssub.s32 %s36, %s48
      %p341 = scmp.eq.s32.totalorder %s340, 0
      %s343 = sadd.s32 %s342, 1
      %s344 = scalar_select %p341, %s342, %s343
      %p347 = pneg %p341
      %p348 = scmp.eq.s32.totalorder %s29, 3
      %p349 = por %p347, %p348
      %p350 = scmp.ne.s32.totalorder %s342, %s345
      %p351 = scmp.eq.s32.totalorder %s29, 0
      %p352 = por %p350, %p351
      %p353 = scmp.ne.s32.totalorder %s342, %s345
      %p354 = scmp.eq.s32.totalorder %s34, 3
      %p355 = por %p353, %p354
      %p356 = scmp.ne.s32.totalorder %s345, %s346
      %p357 = scmp.eq.s32.totalorder %s34, 0
      %p358 = por %p356, %p357
      %p359 = scmp.ne.s32.totalorder %s345, %s346
      %p360 = scmp.eq.s32.totalorder %s35, 3
      %p361 = por %p359, %p360
      %p363 = scmp.ne.s32.totalorder %s346, %s362
      %p364 = scmp.eq.s32.totalorder %s35, 0
      %p365 = por %p363, %p364
      %s366 = ssub.s32 %s36, %s48
      %p367 = scmp.eq.s32.totalorder %s366, 0
      %s369 = sadd.s32 %s368, 1
      %s370 = scalar_select %p367, %s368, %s369
      %p373 = pneg %p367
      %p374 = scmp.eq.s32.totalorder %s29, 3
      %p375 = por %p373, %p374
      %p376 = scmp.ne.s32.totalorder %s368, %s371
      %p377 = scmp.eq.s32.totalorder %s29, 0
      %p378 = por %p376, %p377
      %p379 = scmp.ne.s32.totalorder %s368, %s371
      %p380 = scmp.eq.s32.totalorder %s34, 3
      %p381 = por %p379, %p380
      %p382 = scmp.ne.s32.totalorder %s371, %s372
      %p383 = scmp.eq.s32.totalorder %s34, 0
      %p384 = por %p382, %p383
      %p385 = scmp.ne.s32.totalorder %s371, %s372
      %p386 = scmp.eq.s32.totalorder %s35, 3
      %p387 = por %p385, %p386
      %p389 = scmp.ne.s32.totalorder %s372, %s388
      %p390 = scmp.eq.s32.totalorder %s35, 0
      %p391 = por %p389, %p390
      %p392 = scmp.le.s32.totalorder 1, %s29
      %p393 = scmp.lt.s32.totalorder %s29, 5
      %p394 = pnand %p392, %p393
      %p395 = pneg %p394
      // Predicated region
      $region9: #{mono4dgs_loss.1} parent=5 // pred_check
        _
      $region10: #{mono4dgs_loss.1} parent=5 // pred_check_branch
        %397 = sbr.rel (%p394) target = $region12
      $region11: #{mono4dgs_loss.1} parent=5 // pred_region
        %s398 = ssub.s32 %s29, 1
        // Predicated region
        $region13: #{mono4dgs_loss.1} parent=11 // pred_check
          %p399 = pneg %p212
        $region14: #{mono4dgs_loss.1} parent=11 // pred_check_branch
          %401 = sbr.rel (%p399) target = $region16
        $region15: #{mono4dgs_loss.1} parent=11 // pred_region
          _
        $region16: #{mono4dgs_loss.1} parent=11 // pred_fallthru
          _
        // Predicated region
        $region17: #{mono4dgs_loss.1} parent=11 // pred_check
          %p402 = pneg %p233
        $region18: #{mono4dgs_loss.1} parent=11 // pred_check_branch
          %404 = sbr.rel (%p402) target = $region20
        $region19: #{mono4dgs_loss.1} parent=11 // pred_region
          %s406 = ssub.s32 128, 128
          %407 = vsyncadd [#allocation11], %s406
          %s409 = sshll.u32 [#allocation10], 4
          %s410 = int_to_ptr.vmem [resolvable:$true] %s409
          %412 = dma.hbm_to_vmem [thread:$0]  %s6, 128, %s410, [#allocation11]
        $region20: #{mono4dgs_loss.1} parent=11 // pred_fallthru
          _
        // Predicated region
        $region21: #{mono4dgs_loss.1} parent=11 // pred_check
          %p413 = pneg %p254
        $region22: #{mono4dgs_loss.1} parent=11 // pred_check_branch
          %415 = sbr.rel (%p413) target = $region24
        $region23: #{mono4dgs_loss.1} parent=11 // pred_region
          _
        $region24: #{mono4dgs_loss.1} parent=11 // pred_fallthru
          _
      $region12: #{mono4dgs_loss.1} parent=5 // pred_fallthru
        _
      %p416 = scmp.lt.s32.totalorder %s29, 4
      // Predicated region
      $region25: #{mono4dgs_loss.1} parent=5 // pred_check
        %p417 = pneg %p416
      $region26: #{mono4dgs_loss.1} parent=5 // pred_check_branch
        %419 = sbr.rel (%p417) target = $region28
      $region27: #{mono4dgs_loss.1} parent=5 // pred_region
        // Predicated region
        $region29: #{mono4dgs_loss.1} parent=27 // pred_check
          %p420 = pneg %p65
        $region30: #{mono4dgs_loss.1} parent=27 // pred_check_branch
          %422 = sbr.rel (%p420) target = $region32
        $region31: #{mono4dgs_loss.1} parent=27 // pred_region
          %s423 = sand.u32 %s55, 1
          %s424 = scalar_lea.sflag [#allocation3], %s423
          %s425 = sand.u32 %s55, 1
          %s426 = smul.addr %s425, 768
          %s427 = scalar_lea.vmem [#allocation2], %s426
          %s428 = smul.u32 %s36, 2
          %s429 = sadd.s32 %s428, %s37
          %s430 = smul.u32 96, %s429
          %s432 = ssub.s32 12288, 12288
          %433 = vsyncadd %s424, %s432
          %s434 = smul.addr %s430, 128
          %s435 = scalar_lea.hbm %s0, %s434
          %s436 = sshll.u32 %s427, 4
          %s437 = int_to_ptr.vmem [resolvable:$true] %s436
          %442 = dma.hbm_to_vmem [thread:$0]  %s435, 12288, %s437, %s424, 128, 128, 8
        $region32: #{mono4dgs_loss.1} parent=27 // pred_fallthru
          _
        // Predicated region
        $region33: #{mono4dgs_loss.1} parent=27 // pred_check
          %p443 = pneg %p95
        $region34: #{mono4dgs_loss.1} parent=27 // pred_check_branch
          %445 = sbr.rel (%p443) target = $region36
        $region35: #{mono4dgs_loss.1} parent=27 // pred_region
          %s446 = sand.u32 %s29, 1
          %s447 = scalar_lea.sflag [#allocation5], %s446
          %s448 = sand.u32 %s85, 1
          %s449 = smul.addr %s448, 768
          %s450 = scalar_lea.vmem [#allocation4], %s449
          %s451 = smul.u32 %s36, 2
          %s452 = sadd.s32 %s451, %s37
          %s453 = smul.u32 96, %s452
          %s455 = ssub.s32 12288, 12288
          %456 = vsyncadd %s447, %s455
          %s457 = smul.addr %s453, 128
          %s458 = scalar_lea.hbm %s1, %s457
          %s459 = sshll.u32 %s450, 4
          %s460 = int_to_ptr.vmem [resolvable:$true] %s459
          %465 = dma.hbm_to_vmem [thread:$0]  %s458, 12288, %s460, %s447, 128, 128, 8
        $region36: #{mono4dgs_loss.1} parent=27 // pred_fallthru
          _
        // Predicated region
        $region37: #{mono4dgs_loss.1} parent=27 // pred_check
          %p466 = pneg %p125
        $region38: #{mono4dgs_loss.1} parent=27 // pred_check_branch
          %468 = sbr.rel (%p466) target = $region40
        $region39: #{mono4dgs_loss.1} parent=27 // pred_region
          %s469 = sand.u32 %s29, 1
          %s470 = scalar_lea.sflag [#allocation5], %s469
          %s471 = sand.u32 %s115, 1
          %s472 = smul.addr %s471, 256
          %s473 = scalar_lea.vmem [#allocation6], %s472
          %s474 = smul.u32 %s36, 2
          %s475 = sadd.s32 %s474, %s37
          %s476 = smul.u32 32, %s475
          %s478 = ssub.s32 4096, 4096
          %479 = vsyncadd %s470, %s478
          %s480 = smul.addr %s476, 128
          %s481 = scalar_lea.hbm %s2, %s480
          %s482 = sshll.u32 %s473, 4
          %s483 = int_to_ptr.vmem [resolvable:$true] %s482
          %488 = dma.hbm_to_vmem [thread:$0]  %s481, 4096, %s483, %s470, 128, 128, 8
        $region40: #{mono4dgs_loss.1} parent=27 // pred_fallthru
          _
        // Predicated region
        $region41: #{mono4dgs_loss.1} parent=27 // pred_check
          %p489 = pneg %p155
        $region42: #{mono4dgs_loss.1} parent=27 // pred_check_branch
          %491 = sbr.rel (%p489) target = $region44
        $region43: #{mono4dgs_loss.1} parent=27 // pred_region
          %s492 = sand.u32 %s29, 1
          %s493 = scalar_lea.sflag [#allocation8], %s492
          %s494 = sand.u32 %s145, 1
          %s495 = smul.addr %s494, 256
          %s496 = scalar_lea.vmem [#allocation7], %s495
          %s497 = smul.u32 %s36, 2
          %s498 = sadd.s32 %s497, %s37
          %s499 = smul.u32 32, %s498
          %s501 = ssub.s32 4096, 4096
          %502 = vsyncadd %s493, %s501
          %s503 = smul.addr %s499, 128
          %s504 = scalar_lea.hbm %s3, %s503
          %s505 = sshll.u32 %s496, 4
          %s506 = int_to_ptr.vmem [resolvable:$true] %s505
          %511 = dma.hbm_to_vmem [thread:$0]  %s504, 4096, %s506, %s493, 128, 128, 8
        $region44: #{mono4dgs_loss.1} parent=27 // pred_fallthru
          _
        // Predicated region
        $region45: #{mono4dgs_loss.1} parent=27 // pred_check
          %p512 = pneg %p185
        $region46: #{mono4dgs_loss.1} parent=27 // pred_check_branch
          %514 = sbr.rel (%p512) target = $region48
        $region47: #{mono4dgs_loss.1} parent=27 // pred_region
          %s515 = sand.u32 %s29, 1
          %s516 = scalar_lea.sflag [#allocation8], %s515
          %s517 = sand.u32 %s175, 1
          %s518 = smul.addr %s517, 256
          %s519 = scalar_lea.vmem [#allocation9], %s518
          %s520 = smul.u32 %s36, 2
          %s521 = sadd.s32 %s520, %s37
          %s522 = smul.u32 32, %s521
          %s524 = ssub.s32 4096, 4096
          %525 = vsyncadd %s516, %s524
          %s526 = smul.addr %s522, 128
          %s527 = scalar_lea.hbm %s4, %s526
          %s528 = sshll.u32 %s519, 4
          %s529 = int_to_ptr.vmem [resolvable:$true] %s528
          %534 = dma.hbm_to_vmem [thread:$0]  %s527, 4096, %s529, %s516, 128, 128, 8
        $region48: #{mono4dgs_loss.1} parent=27 // pred_fallthru
          _
      $region28: #{mono4dgs_loss.1} parent=5 // pred_fallthru
        _
      %p535 = scmp.le.s32.totalorder 1, %s29
      %p536 = scmp.lt.s32.totalorder %s29, 5
      %p537 = pnand %p535, %p536
      %p538 = pneg %p537
      // Predicated region
      $region49: #{mono4dgs_loss.1} parent=5 // pred_check
        _
      $region50: #{mono4dgs_loss.1} parent=5 // pred_check_branch
        %540 = sbr.rel (%p537) target = $region52
      $region51: #{mono4dgs_loss.1} parent=5 // pred_region
        %s541 = ssub.s32 %s29, 1
        %s542 = sand.u32 %s58, 1
        %s543 = scalar_lea.sflag [#allocation3], %s542
        %s544 = sand.u32 %s58, 1
        %s545 = smul.addr %s544, 768
        %s546 = scalar_lea.vmem [#allocation2], %s545
        // Predicated region
        $region53: #{mono4dgs_loss.1} parent=51 // pred_check
          %p547 = pneg %p71
        $region54: #{mono4dgs_loss.1} parent=51 // pred_check_branch
          %549 = sbr.rel (%p547) target = $region56
        $region55: #{mono4dgs_loss.1} parent=51 // pred_region
          %550 = dma.done %s543, 12288
        $region56: #{mono4dgs_loss.1} parent=51 // pred_fallthru
          _
        %s551 = sand.u32 %s34, 1
        %s552 = scalar_lea.sflag [#allocation5], %s551
        %s553 = sand.u32 %s88, 1
        %s554 = smul.addr %s553, 768
        %s555 = scalar_lea.vmem [#allocation4], %s554
        // Predicated region
        $region57: #{mono4dgs_loss.1} parent=51 // pred_check
          %p556 = pneg %p101
        $region58: #{mono4dgs_loss.1} parent=51 // pred_check_branch
          %558 = sbr.rel (%p556) target = $region60
        $region59: #{mono4dgs_loss.1} parent=51 // pred_region
          %559 = dma.done %s552, 12288
        $region60: #{mono4dgs_loss.1} parent=51 // pred_fallthru
          _
        %s560 = sand.u32 %s34, 1
        %s561 = scalar_lea.sflag [#allocation5], %s560
        %s562 = sand.u32 %s118, 1
        %s563 = smul.addr %s562, 256
        %s564 = scalar_lea.vmem [#allocation6], %s563
        // Predicated region
        $region61: #{mono4dgs_loss.1} parent=51 // pred_check
          %p565 = pneg %p131
        $region62: #{mono4dgs_loss.1} parent=51 // pred_check_branch
          %567 = sbr.rel (%p565) target = $region64
        $region63: #{mono4dgs_loss.1} parent=51 // pred_region
          %568 = dma.done %s561, 4096
        $region64: #{mono4dgs_loss.1} parent=51 // pred_fallthru
          _
        %s569 = sand.u32 %s34, 1
        %s570 = scalar_lea.sflag [#allocation8], %s569
        %s571 = sand.u32 %s148, 1
        %s572 = smul.addr %s571, 256
        %s573 = scalar_lea.vmem [#allocation7], %s572
        // Predicated region
        $region65: #{mono4dgs_loss.1} parent=51 // pred_check
          %p574 = pneg %p161
        $region66: #{mono4dgs_loss.1} parent=51 // pred_check_branch
          %576 = sbr.rel (%p574) target = $region68
        $region67: #{mono4dgs_loss.1} parent=51 // pred_region
          %577 = dma.done %s570, 4096
        $region68: #{mono4dgs_loss.1} parent=51 // pred_fallthru
          _
        %s578 = sand.u32 %s34, 1
        %s579 = scalar_lea.sflag [#allocation8], %s578
        %s580 = sand.u32 %s178, 1
        %s581 = smul.addr %s580, 256
        %s582 = scalar_lea.vmem [#allocation9], %s581
        // Predicated region
        $region69: #{mono4dgs_loss.1} parent=51 // pred_check
          %p583 = pneg %p191
        $region70: #{mono4dgs_loss.1} parent=51 // pred_check_branch
          %585 = sbr.rel (%p583) target = $region72
        $region71: #{mono4dgs_loss.1} parent=51 // pred_region
          %586 = dma.done %s579, 4096
        $region72: #{mono4dgs_loss.1} parent=51 // pred_fallthru
          _
        // Predicated region
        $region73: #{mono4dgs_loss.1} parent=51 // pred_check
          %p587 = pneg %p233
        $region74: #{mono4dgs_loss.1} parent=51 // pred_check_branch
          %589 = sbr.rel (%p587) target = $region76
        $region75: #{mono4dgs_loss.1} parent=51 // pred_region
          %590 = dma.done [#allocation11], 128
        $region76: #{mono4dgs_loss.1} parent=51 // pred_fallthru
          _
        %s591 = sand.u32 %s58, 1
        %s592 = scalar_lea.sflag [#allocation3], %s591
        %s593 = sand.u32 %s58, 1
        %s594 = smul.addr %s593, 768
        %s595 = scalar_lea.vmem [#allocation2], %s594
        %p596 = pneg %p71
        %p597 = pneg %p68
        %s598 = sand.u32 %s34, 1
        %s599 = scalar_lea.sflag [#allocation5], %s598
        %s600 = sand.u32 %s88, 1
        %s601 = smul.addr %s600, 768
        %s602 = scalar_lea.vmem [#allocation4], %s601
        %p603 = pneg %p101
        %p604 = pneg %p98
        %s605 = sand.u32 %s34, 1
        %s606 = scalar_lea.sflag [#allocation5], %s605
        %s607 = sand.u32 %s118, 1
        %s608 = smul.addr %s607, 256
        %s609 = scalar_lea.vmem [#allocation6], %s608
        %p610 = pneg %p131
        %p611 = pneg %p128
        %s612 = sand.u32 %s34, 1
        %s613 = scalar_lea.sflag [#allocation8], %s612
        %s614 = sand.u32 %s148, 1
        %s615 = smul.addr %s614, 256
        %s616 = scalar_lea.vmem [#allocation7], %s615
        %p617 = pneg %p161
        %p618 = pneg %p158
        %s619 = sand.u32 %s34, 1
        %s620 = scalar_lea.sflag [#allocation8], %s619
        %s621 = sand.u32 %s178, 1
        %s622 = smul.addr %s621, 256
        %s623 = scalar_lea.vmem [#allocation9], %s622
        %p624 = pneg %p191
        %p625 = pneg %p188
        %p626 = pneg %p212
        %p627 = pneg %p209
        %p628 = pneg %p233
        %p629 = pneg %p230
        %p630 = pneg %p254
        %p631 = pneg %p251
        %p632 = pneg %p280
        %p633 = pneg %p277
        %p634 = scmp.lt.s32.totalorder %s38, 1
        %s635 = scalar_select %p634, %s38, 1
        %s636 = smul.addr %s635, 8
        %s637 = scalar_lea.vmem %s8, %s636
        %p638 = pneg %p306
        %p639 = pneg %p303
        %p640 = scmp.lt.s32.totalorder %s38, 1
        %s641 = scalar_select %p640, %s38, 1
        %s642 = smul.addr %s641, 8
        %s643 = scalar_lea.vmem %s9, %s642
        %p644 = pneg %p332
        %p645 = pneg %p329
        %p646 = scmp.lt.s32.totalorder %s38, 1
        %s647 = scalar_select %p646, %s38, 1
        %s648 = smul.addr %s647, 8
        %s649 = scalar_lea.vmem %s10, %s648
        %p650 = pneg %p358
        %p651 = pneg %p355
        %p652 = scmp.lt.s32.totalorder %s38, 1
        %s653 = scalar_select %p652, %s38, 1
        %s654 = smul.addr %s653, 8
        %s655 = scalar_lea.vmem %s11, %s654
        %p656 = pneg %p384
        %p657 = pneg %p381
        %p658 = scmp.lt.s32.totalorder %s38, 1
        %s659 = scalar_select %p658, %s38, 1
        %s660 = smul.addr %s659, 8
        %s661 = scalar_lea.vmem %s12, %s660
        %s662 = smul.u32 %s38, 2
        %s663 = sadd.s32 %s662, %s39
        %s664 = smul.u32 96, %s663
        %s665 = smul.u32 %s38, 2
        %s666 = sadd.s32 %s665, %s39
        %s667 = smul.u32 96, %s666
        %s668 = smul.u32 %s38, 2
        %s669 = sadd.s32 %s668, %s39
        %s670 = smul.u32 32, %s669
        %s671 = smul.u32 %s38, 2
        %s672 = sadd.s32 %s671, %s39
        %s673 = smul.u32 32, %s672
        %s674 = smul.u32 %s38, 2
        %s675 = sadd.s32 %s674, %s39
        %s676 = smul.u32 32, %s675
        %p677 = scmp.lt.s32.totalorder %s38, 1
        %s678 = scalar_select %p677, %s38, 1
        %s679 = smul.addr %s678, 8
        %s680 = scalar_lea.vmem %s8, %s679
        %p681 = scmp.lt.s32.totalorder %s38, 1
        %s682 = scalar_select %p681, %s38, 1
        %s683 = smul.addr %s682, 8
        %s684 = scalar_lea.vmem %s9, %s683
        %p685 = scmp.lt.s32.totalorder %s38, 1
        %s686 = scalar_select %p685, %s38, 1
        %s687 = smul.addr %s686, 8
        %s688 = scalar_lea.vmem %s10, %s687
        %p689 = scmp.lt.s32.totalorder %s38, 1
        %s690 = scalar_select %p689, %s38, 1
        %s691 = smul.addr %s690, 8
        %s692 = scalar_lea.vmem %s11, %s691
        %p693 = scmp.lt.s32.totalorder %s38, 1
        %s694 = scalar_select %p693, %s38, 1
        %s695 = smul.addr %s694, 8
        %s696 = scalar_lea.vmem %s12, %s695
        %p697 = scmp.eq.s32.totalorder %s39, 0
        // Predicated region
        $region77: #{mono4dgs_loss.1} parent=51 // pred_check
          %p698 = pneg %p697
        $region78: #{mono4dgs_loss.1} parent=51 // pred_check_branch
          %700 = sbr.rel (%p698) target = $region80
        $region79: #{mono4dgs_loss.1} parent=51 // pred_region
          %701 = vst [vmem:[%s680] sm:$0xff] 0.0
          %702 = vst [vmem:[%s684] sm:$0xff] 0.0
          %703 = vst [vmem:[%s688] sm:$0xff] 0.0
          %704 = vst [vmem:[%s692] sm:$0xff] 0.0
          %705 = vst [vmem:[%s696] sm:$0xff] 0.0
        $region80: #{mono4dgs_loss.1} parent=51 // pred_fallthru
          _
        %v706 = vld [vmem:[%s680] sm:$0xff]
        %v707 = vld [vmem:[%s546] sm:$0xff]
        %v708 = vld [vmem:[%s546 + $0x8] sm:$0xff]
        %v709 = vld [vmem:[%s546 + $0x10] sm:$0xff]
        %v710 = vld [vmem:[%s546 + $0x18] sm:$0xff]
        %v711 = vld [vmem:[%s546 + $0x20] sm:$0xff]
        %v712 = vld [vmem:[%s546 + $0x28] sm:$0xff]
        %v713 = vld [vmem:[%s546 + $0x30] sm:$0xff]
        %v714 = vld [vmem:[%s546 + $0x38] sm:$0xff]
        %v715 = vld [vmem:[%s546 + $0x40] sm:$0xff]
        %v716 = vld [vmem:[%s546 + $0x48] sm:$0xff]
        %v717 = vld [vmem:[%s546 + $0x50] sm:$0xff]
        %v718 = vld [vmem:[%s546 + $0x58] sm:$0xff]
        %v719 = vld [vmem:[%s546 + $0x60] sm:$0xff]
        %v720 = vld [vmem:[%s546 + $0x68] sm:$0xff]
        %v721 = vld [vmem:[%s546 + $0x70] sm:$0xff]
        %v722 = vld [vmem:[%s546 + $0x78] sm:$0xff]
        %v723 = vld [vmem:[%s546 + $0x80] sm:$0xff]
        %v724 = vld [vmem:[%s546 + $0x88] sm:$0xff]
        %v725 = vld [vmem:[%s546 + $0x90] sm:$0xff]
        %v726 = vld [vmem:[%s546 + $0x98] sm:$0xff]
        %v727 = vld [vmem:[%s546 + $0xa0] sm:$0xff]
        %v728 = vld [vmem:[%s546 + $0xa8] sm:$0xff]
        %v729 = vld [vmem:[%s546 + $0xb0] sm:$0xff]
        %v730 = vld [vmem:[%s546 + $0xb8] sm:$0xff]
        %v731 = vld [vmem:[%s546 + $0xc0] sm:$0xff]
        %v732 = vld [vmem:[%s546 + $0xc8] sm:$0xff]
        %v733 = vld [vmem:[%s546 + $0xd0] sm:$0xff]
        %v734 = vld [vmem:[%s546 + $0xd8] sm:$0xff]
        %v735 = vld [vmem:[%s546 + $0xe0] sm:$0xff]
        %v736 = vld [vmem:[%s546 + $0xe8] sm:$0xff]
        %v737 = vld [vmem:[%s546 + $0xf0] sm:$0xff]
        %v738 = vld [vmem:[%s546 + $0xf8] sm:$0xff]
        %v739 = vld [vmem:[%s546 + $0x100] sm:$0xff]
        %v740 = vld [vmem:[%s546 + $0x108] sm:$0xff]
        %v741 = vld [vmem:[%s546 + $0x110] sm:$0xff]
        %v742 = vld [vmem:[%s546 + $0x118] sm:$0xff]
        %v743 = vld [vmem:[%s546 + $0x120] sm:$0xff]
        %v744 = vld [vmem:[%s546 + $0x128] sm:$0xff]
        %v745 = vld [vmem:[%s546 + $0x130] sm:$0xff]
        %v746 = vld [vmem:[%s546 + $0x138] sm:$0xff]
        %v747 = vld [vmem:[%s546 + $0x140] sm:$0xff]
        %v748 = vld [vmem:[%s546 + $0x148] sm:$0xff]
        %v749 = vld [vmem:[%s546 + $0x150] sm:$0xff]
        %v750 = vld [vmem:[%s546 + $0x158] sm:$0xff]
        %v751 = vld [vmem:[%s546 + $0x160] sm:$0xff]
        %v752 = vld [vmem:[%s546 + $0x168] sm:$0xff]
        %v753 = vld [vmem:[%s546 + $0x170] sm:$0xff]
        %v754 = vld [vmem:[%s546 + $0x178] sm:$0xff]
        %v755 = vld [vmem:[%s546 + $0x180] sm:$0xff]
        %v756 = vld [vmem:[%s546 + $0x188] sm:$0xff]
        %v757 = vld [vmem:[%s546 + $0x190] sm:$0xff]
        %v758 = vld [vmem:[%s546 + $0x198] sm:$0xff]
        %v759 = vld [vmem:[%s546 + $0x1a0] sm:$0xff]
        %v760 = vld [vmem:[%s546 + $0x1a8] sm:$0xff]
        %v761 = vld [vmem:[%s546 + $0x1b0] sm:$0xff]
        %v762 = vld [vmem:[%s546 + $0x1b8] sm:$0xff]
        %v763 = vld [vmem:[%s546 + $0x1c0] sm:$0xff]
        %v764 = vld [vmem:[%s546 + $0x1c8] sm:$0xff]
        %v765 = vld [vmem:[%s546 + $0x1d0] sm:$0xff]
        %v766 = vld [vmem:[%s546 + $0x1d8] sm:$0xff]
        %v767 = vld [vmem:[%s546 + $0x1e0] sm:$0xff]
        %v768 = vld [vmem:[%s546 + $0x1e8] sm:$0xff]
        %v769 = vld [vmem:[%s546 + $0x1f0] sm:$0xff]
        %v770 = vld [vmem:[%s546 + $0x1f8] sm:$0xff]
        %v771 = vld [vmem:[%s546 + $0x200] sm:$0xff]
        %v772 = vld [vmem:[%s546 + $0x208] sm:$0xff]
        %v773 = vld [vmem:[%s546 + $0x210] sm:$0xff]
        %v774 = vld [vmem:[%s546 + $0x218] sm:$0xff]
        %v775 = vld [vmem:[%s546 + $0x220] sm:$0xff]
        %v776 = vld [vmem:[%s546 + $0x228] sm:$0xff]
        %v777 = vld [vmem:[%s546 + $0x230] sm:$0xff]
        %v778 = vld [vmem:[%s546 + $0x238] sm:$0xff]
        %v779 = vld [vmem:[%s546 + $0x240] sm:$0xff]
        %v780 = vld [vmem:[%s546 + $0x248] sm:$0xff]
        %v781 = vld [vmem:[%s546 + $0x250] sm:$0xff]
        %v782 = vld [vmem:[%s546 + $0x258] sm:$0xff]
        %v783 = vld [vmem:[%s546 + $0x260] sm:$0xff]
        %v784 = vld [vmem:[%s546 + $0x268] sm:$0xff]
        %v785 = vld [vmem:[%s546 + $0x270] sm:$0xff]
        %v786 = vld [vmem:[%s546 + $0x278] sm:$0xff]
        %v787 = vld [vmem:[%s546 + $0x280] sm:$0xff]
        %v788 = vld [vmem:[%s546 + $0x288] sm:$0xff]
        %v789 = vld [vmem:[%s546 + $0x290] sm:$0xff]
        %v790 = vld [vmem:[%s546 + $0x298] sm:$0xff]
        %v791 = vld [vmem:[%s546 + $0x2a0] sm:$0xff]
        %v792 = vld [vmem:[%s546 + $0x2a8] sm:$0xff]
        %v793 = vld [vmem:[%s546 + $0x2b0] sm:$0xff]
        %v794 = vld [vmem:[%s546 + $0x2b8] sm:$0xff]
        %v795 = vld [vmem:[%s546 + $0x2c0] sm:$0xff]
        %v796 = vld [vmem:[%s546 + $0x2c8] sm:$0xff]
        %v797 = vld [vmem:[%s546 + $0x2d0] sm:$0xff]
        %v798 = vld [vmem:[%s546 + $0x2d8] sm:$0xff]
        %v799 = vld [vmem:[%s546 + $0x2e0] sm:$0xff]
        %v800 = vld [vmem:[%s546 + $0x2e8] sm:$0xff]
        %v801 = vld [vmem:[%s546 + $0x2f0] sm:$0xff]
        %v802 = vld [vmem:[%s546 + $0x2f8] sm:$0xff]
        %v803 = vld [vmem:[%s555] sm:$0xff]
        %v804 = vld [vmem:[%s555 + $0x8] sm:$0xff]
        %v805 = vld [vmem:[%s555 + $0x10] sm:$0xff]
        %v806 = vld [vmem:[%s555 + $0x18] sm:$0xff]
        %v807 = vld [vmem:[%s555 + $0x20] sm:$0xff]
        %v808 = vld [vmem:[%s555 + $0x28] sm:$0xff]
        %v809 = vld [vmem:[%s555 + $0x30] sm:$0xff]
        %v810 = vld [vmem:[%s555 + $0x38] sm:$0xff]
        %v811 = vld [vmem:[%s555 + $0x40] sm:$0xff]
        %v812 = vld [vmem:[%s555 + $0x48] sm:$0xff]
        %v813 = vld [vmem:[%s555 + $0x50] sm:$0xff]
        %v814 = vld [vmem:[%s555 + $0x58] sm:$0xff]
        %v815 = vld [vmem:[%s555 + $0x60] sm:$0xff]
        %v816 = vld [vmem:[%s555 + $0x68] sm:$0xff]
        %v817 = vld [vmem:[%s555 + $0x70] sm:$0xff]
        %v818 = vld [vmem:[%s555 + $0x78] sm:$0xff]
        %v819 = vld [vmem:[%s555 + $0x80] sm:$0xff]
        %v820 = vld [vmem:[%s555 + $0x88] sm:$0xff]
        %v821 = vld [vmem:[%s555 + $0x90] sm:$0xff]
        %v822 = vld [vmem:[%s555 + $0x98] sm:$0xff]
        %v823 = vld [vmem:[%s555 + $0xa0] sm:$0xff]
        %v824 = vld [vmem:[%s555 + $0xa8] sm:$0xff]
        %v825 = vld [vmem:[%s555 + $0xb0] sm:$0xff]
        %v826 = vld [vmem:[%s555 + $0xb8] sm:$0xff]
        %v827 = vld [vmem:[%s555 + $0xc0] sm:$0xff]
        %v828 = vld [vmem:[%s555 + $0xc8] sm:$0xff]
        %v829 = vld [vmem:[%s555 + $0xd0] sm:$0xff]
        %v830 = vld [vmem:[%s555 + $0xd8] sm:$0xff]
        %v831 = vld [vmem:[%s555 + $0xe0] sm:$0xff]
        %v832 = vld [vmem:[%s555 + $0xe8] sm:$0xff]
        %v833 = vld [vmem:[%s555 + $0xf0] sm:$0xff]
        %v834 = vld [vmem:[%s555 + $0xf8] sm:$0xff]
        %v835 = vld [vmem:[%s555 + $0x100] sm:$0xff]
        %v836 = vld [vmem:[%s555 + $0x108] sm:$0xff]
        %v837 = vld [vmem:[%s555 + $0x110] sm:$0xff]
        %v838 = vld [vmem:[%s555 + $0x118] sm:$0xff]
        %v839 = vld [vmem:[%s555 + $0x120] sm:$0xff]
        %v840 = vld [vmem:[%s555 + $0x128] sm:$0xff]
        %v841 = vld [vmem:[%s555 + $0x130] sm:$0xff]
        %v842 = vld [vmem:[%s555 + $0x138] sm:$0xff]
        %v843 = vld [vmem:[%s555 + $0x140] sm:$0xff]
        %v844 = vld [vmem:[%s555 + $0x148] sm:$0xff]
        %v845 = vld [vmem:[%s555 + $0x150] sm:$0xff]
        %v846 = vld [vmem:[%s555 + $0x158] sm:$0xff]
        %v847 = vld [vmem:[%s555 + $0x160] sm:$0xff]
        %v848 = vld [vmem:[%s555 + $0x168] sm:$0xff]
        %v849 = vld [vmem:[%s555 + $0x170] sm:$0xff]
        %v850 = vld [vmem:[%s555 + $0x178] sm:$0xff]
        %v851 = vld [vmem:[%s555 + $0x180] sm:$0xff]
        %v852 = vld [vmem:[%s555 + $0x188] sm:$0xff]
        %v853 = vld [vmem:[%s555 + $0x190] sm:$0xff]
        %v854 = vld [vmem:[%s555 + $0x198] sm:$0xff]
        %v855 = vld [vmem:[%s555 + $0x1a0] sm:$0xff]
        %v856 = vld [vmem:[%s555 + $0x1a8] sm:$0xff]
        %v857 = vld [vmem:[%s555 + $0x1b0] sm:$0xff]
        %v858 = vld [vmem:[%s555 + $0x1b8] sm:$0xff]
        %v859 = vld [vmem:[%s555 + $0x1c0] sm:$0xff]
        %v860 = vld [vmem:[%s555 + $0x1c8] sm:$0xff]
        %v861 = vld [vmem:[%s555 + $0x1d0] sm:$0xff]
        %v862 = vld [vmem:[%s555 + $0x1d8] sm:$0xff]
        %v863 = vld [vmem:[%s555 + $0x1e0] sm:$0xff]
        %v864 = vld [vmem:[%s555 + $0x1e8] sm:$0xff]
        %v865 = vld [vmem:[%s555 + $0x1f0] sm:$0xff]
        %v866 = vld [vmem:[%s555 + $0x1f8] sm:$0xff]
        %v867 = vld [vmem:[%s555 + $0x200] sm:$0xff]
        %v868 = vld [vmem:[%s555 + $0x208] sm:$0xff]
        %v869 = vld [vmem:[%s555 + $0x210] sm:$0xff]
        %v870 = vld [vmem:[%s555 + $0x218] sm:$0xff]
        %v871 = vld [vmem:[%s555 + $0x220] sm:$0xff]
        %v872 = vld [vmem:[%s555 + $0x228] sm:$0xff]
        %v873 = vld [vmem:[%s555 + $0x230] sm:$0xff]
        %v874 = vld [vmem:[%s555 + $0x238] sm:$0xff]
        %v875 = vld [vmem:[%s555 + $0x240] sm:$0xff]
        %v876 = vld [vmem:[%s555 + $0x248] sm:$0xff]
        %v877 = vld [vmem:[%s555 + $0x250] sm:$0xff]
        %v878 = vld [vmem:[%s555 + $0x258] sm:$0xff]
        %v879 = vld [vmem:[%s555 + $0x260] sm:$0xff]
        %v880 = vld [vmem:[%s555 + $0x268] sm:$0xff]
        %v881 = vld [vmem:[%s555 + $0x270] sm:$0xff]
        %v882 = vld [vmem:[%s555 + $0x278] sm:$0xff]
        %v883 = vld [vmem:[%s555 + $0x280] sm:$0xff]
        %v884 = vld [vmem:[%s555 + $0x288] sm:$0xff]
        %v885 = vld [vmem:[%s555 + $0x290] sm:$0xff]
        %v886 = vld [vmem:[%s555 + $0x298] sm:$0xff]
        %v887 = vld [vmem:[%s555 + $0x2a0] sm:$0xff]
        %v888 = vld [vmem:[%s555 + $0x2a8] sm:$0xff]
        %v889 = vld [vmem:[%s555 + $0x2b0] sm:$0xff]
        %v890 = vld [vmem:[%s555 + $0x2b8] sm:$0xff]
        %v891 = vld [vmem:[%s555 + $0x2c0] sm:$0xff]
        %v892 = vld [vmem:[%s555 + $0x2c8] sm:$0xff]
        %v893 = vld [vmem:[%s555 + $0x2d0] sm:$0xff]
        %v894 = vld [vmem:[%s555 + $0x2d8] sm:$0xff]
        %v895 = vld [vmem:[%s555 + $0x2e0] sm:$0xff]
        %v896 = vld [vmem:[%s555 + $0x2e8] sm:$0xff]
        %v897 = vld [vmem:[%s555 + $0x2f0] sm:$0xff]
        %v898 = vld [vmem:[%s555 + $0x2f8] sm:$0xff]
        %v899 = vsub.f32 %v707, %v803
        %v900 = vsub.f32 %v708, %v804
        %v901 = vsub.f32 %v709, %v805
        %v902 = vsub.f32 %v710, %v806
        %v903 = vsub.f32 %v711, %v807
        %v904 = vsub.f32 %v712, %v808
        %v905 = vsub.f32 %v713, %v809
        %v906 = vsub.f32 %v714, %v810
        %v907 = vsub.f32 %v715, %v811
        %v908 = vsub.f32 %v716, %v812
        %v909 = vsub.f32 %v717, %v813
        %v910 = vsub.f32 %v718, %v814
        %v911 = vsub.f32 %v719, %v815
        %v912 = vsub.f32 %v720, %v816
        %v913 = vsub.f32 %v721, %v817
        %v914 = vsub.f32 %v722, %v818
        %v915 = vsub.f32 %v723, %v819
        %v916 = vsub.f32 %v724, %v820
        %v917 = vsub.f32 %v725, %v821
        %v918 = vsub.f32 %v726, %v822
        %v919 = vsub.f32 %v727, %v823
        %v920 = vsub.f32 %v728, %v824
        %v921 = vsub.f32 %v729, %v825
        %v922 = vsub.f32 %v730, %v826
        %v923 = vsub.f32 %v731, %v827
        %v924 = vsub.f32 %v732, %v828
        %v925 = vsub.f32 %v733, %v829
        %v926 = vsub.f32 %v734, %v830
        %v927 = vsub.f32 %v735, %v831
        %v928 = vsub.f32 %v736, %v832
        %v929 = vsub.f32 %v737, %v833
        %v930 = vsub.f32 %v738, %v834
        %v931 = vsub.f32 %v739, %v835
        %v932 = vsub.f32 %v740, %v836
        %v933 = vsub.f32 %v741, %v837
        %v934 = vsub.f32 %v742, %v838
        %v935 = vsub.f32 %v743, %v839
        %v936 = vsub.f32 %v744, %v840
        %v937 = vsub.f32 %v745, %v841
        %v938 = vsub.f32 %v746, %v842
        %v939 = vsub.f32 %v747, %v843
        %v940 = vsub.f32 %v748, %v844
        %v941 = vsub.f32 %v749, %v845
        %v942 = vsub.f32 %v750, %v846
        %v943 = vsub.f32 %v751, %v847
        %v944 = vsub.f32 %v752, %v848
        %v945 = vsub.f32 %v753, %v849
        %v946 = vsub.f32 %v754, %v850
        %v947 = vsub.f32 %v755, %v851
        %v948 = vsub.f32 %v756, %v852
        %v949 = vsub.f32 %v757, %v853
        %v950 = vsub.f32 %v758, %v854
        %v951 = vsub.f32 %v759, %v855
        %v952 = vsub.f32 %v760, %v856
        %v953 = vsub.f32 %v761, %v857
        %v954 = vsub.f32 %v762, %v858
        %v955 = vsub.f32 %v763, %v859
        %v956 = vsub.f32 %v764, %v860
        %v957 = vsub.f32 %v765, %v861
        %v958 = vsub.f32 %v766, %v862
        %v959 = vsub.f32 %v767, %v863
        %v960 = vsub.f32 %v768, %v864
        %v961 = vsub.f32 %v769, %v865
        %v962 = vsub.f32 %v770, %v866
        %v963 = vsub.f32 %v771, %v867
        %v964 = vsub.f32 %v772, %v868
        %v965 = vsub.f32 %v773, %v869
        %v966 = vsub.f32 %v774, %v870
        %v967 = vsub.f32 %v775, %v871
        %v968 = vsub.f32 %v776, %v872
        %v969 = vsub.f32 %v777, %v873
        %v970 = vsub.f32 %v778, %v874
        %v971 = vsub.f32 %v779, %v875
        %v972 = vsub.f32 %v780, %v876
        %v973 = vsub.f32 %v781, %v877
        %v974 = vsub.f32 %v782, %v878
        %v975 = vsub.f32 %v783, %v879
        %v976 = vsub.f32 %v784, %v880
        %v977 = vsub.f32 %v785, %v881
        %v978 = vsub.f32 %v786, %v882
        %v979 = vsub.f32 %v787, %v883
        %v980 = vsub.f32 %v788, %v884
        %v981 = vsub.f32 %v789, %v885
        %v982 = vsub.f32 %v790, %v886
        %v983 = vsub.f32 %v791, %v887
        %v984 = vsub.f32 %v792, %v888
        %v985 = vsub.f32 %v793, %v889
        %v986 = vsub.f32 %v794, %v890
        %v987 = vsub.f32 %v795, %v891
        %v988 = vsub.f32 %v796, %v892
        %v989 = vsub.f32 %v797, %v893
        %v990 = vsub.f32 %v798, %v894
        %v991 = vsub.f32 %v799, %v895
        %v992 = vsub.f32 %v800, %v896
        %v993 = vsub.f32 %v801, %v897
        %v994 = vsub.f32 %v802, %v898
        %v995 = vand.u32 2147483647, %v899
        %v996 = vand.u32 2147483647, %v900
        %v997 = vand.u32 2147483647, %v901
        %v998 = vand.u32 2147483647, %v902
        %v999 = vand.u32 2147483647, %v903
        %v1000 = vand.u32 2147483647, %v904
        %v1001 = vand.u32 2147483647, %v905
        %v1002 = vand.u32 2147483647, %v906
        %v1003 = vand.u32 2147483647, %v907
        %v1004 = vand.u32 2147483647, %v908
        %v1005 = vand.u32 2147483647, %v909
        %v1006 = vand.u32 2147483647, %v910
        %v1007 = vand.u32 2147483647, %v911
        %v1008 = vand.u32 2147483647, %v912
        %v1009 = vand.u32 2147483647, %v913
        %v1010 = vand.u32 2147483647, %v914
        %v1011 = vand.u32 2147483647, %v915
        %v1012 = vand.u32 2147483647, %v916
        %v1013 = vand.u32 2147483647, %v917
        %v1014 = vand.u32 2147483647, %v918
        %v1015 = vand.u32 2147483647, %v919
        %v1016 = vand.u32 2147483647, %v920
        %v1017 = vand.u32 2147483647, %v921
        %v1018 = vand.u32 2147483647, %v922
        %v1019 = vand.u32 2147483647, %v923
        %v1020 = vand.u32 2147483647, %v924
        %v1021 = vand.u32 2147483647, %v925
        %v1022 = vand.u32 2147483647, %v926
        %v1023 = vand.u32 2147483647, %v927
        %v1024 = vand.u32 2147483647, %v928
        %v1025 = vand.u32 2147483647, %v929
        %v1026 = vand.u32 2147483647, %v930
        %v1027 = vand.u32 2147483647, %v931
        %v1028 = vand.u32 2147483647, %v932
        %v1029 = vand.u32 2147483647, %v933
        %v1030 = vand.u32 2147483647, %v934
        %v1031 = vand.u32 2147483647, %v935
        %v1032 = vand.u32 2147483647, %v936
        %v1033 = vand.u32 2147483647, %v937
        %v1034 = vand.u32 2147483647, %v938
        %v1035 = vand.u32 2147483647, %v939
        %v1036 = vand.u32 2147483647, %v940
        %v1037 = vand.u32 2147483647, %v941
        %v1038 = vand.u32 2147483647, %v942
        %v1039 = vand.u32 2147483647, %v943
        %v1040 = vand.u32 2147483647, %v944
        %v1041 = vand.u32 2147483647, %v945
        %v1042 = vand.u32 2147483647, %v946
        %v1043 = vand.u32 2147483647, %v947
        %v1044 = vand.u32 2147483647, %v948
        %v1045 = vand.u32 2147483647, %v949
        %v1046 = vand.u32 2147483647, %v950
        %v1047 = vand.u32 2147483647, %v951
        %v1048 = vand.u32 2147483647, %v952
        %v1049 = vand.u32 2147483647, %v953
        %v1050 = vand.u32 2147483647, %v954
        %v1051 = vand.u32 2147483647, %v955
        %v1052 = vand.u32 2147483647, %v956
        %v1053 = vand.u32 2147483647, %v957
        %v1054 = vand.u32 2147483647, %v958
        %v1055 = vand.u32 2147483647, %v959
        %v1056 = vand.u32 2147483647, %v960
        %v1057 = vand.u32 2147483647, %v961
        %v1058 = vand.u32 2147483647, %v962
        %v1059 = vand.u32 2147483647, %v963
        %v1060 = vand.u32 2147483647, %v964
        %v1061 = vand.u32 2147483647, %v965
        %v1062 = vand.u32 2147483647, %v966
        %v1063 = vand.u32 2147483647, %v967
        %v1064 = vand.u32 2147483647, %v968
        %v1065 = vand.u32 2147483647, %v969
        %v1066 = vand.u32 2147483647, %v970
        %v1067 = vand.u32 2147483647, %v971
        %v1068 = vand.u32 2147483647, %v972
        %v1069 = vand.u32 2147483647, %v973
        %v1070 = vand.u32 2147483647, %v974
        %v1071 = vand.u32 2147483647, %v975
        %v1072 = vand.u32 2147483647, %v976
        %v1073 = vand.u32 2147483647, %v977
        %v1074 = vand.u32 2147483647, %v978
        %v1075 = vand.u32 2147483647, %v979
        %v1076 = vand.u32 2147483647, %v980
        %v1077 = vand.u32 2147483647, %v981
        %v1078 = vand.u32 2147483647, %v982
        %v1079 = vand.u32 2147483647, %v983
        %v1080 = vand.u32 2147483647, %v984
        %v1081 = vand.u32 2147483647, %v985
        %v1082 = vand.u32 2147483647, %v986
        %v1083 = vand.u32 2147483647, %v987
        %v1084 = vand.u32 2147483647, %v988
        %v1085 = vand.u32 2147483647, %v989
        %v1086 = vand.u32 2147483647, %v990
        %v1087 = vand.u32 2147483647, %v991
        %v1088 = vand.u32 2147483647, %v992
        %v1089 = vand.u32 2147483647, %v993
        %v1090 = vand.u32 2147483647, %v994
        %v1091 = vadd.f32 %v995, %v996
        %v1092 = vadd.f32 %v1091, %v997
        %v1093 = vadd.f32 %v1092, %v998
        %v1094 = vadd.f32 %v1093, %v999
        %v1095 = vadd.f32 %v1094, %v1000
        %v1096 = vadd.f32 %v1095, %v1001
        %v1097 = vadd.f32 %v1096, %v1002
        %v1098 = vadd.f32 %v1097, %v1003
        %v1099 = vadd.f32 %v1098, %v1004
        %v1100 = vadd.f32 %v1099, %v1005
        %v1101 = vadd.f32 %v1100, %v1006
        %v1102 = vadd.f32 %v1101, %v1007
        %v1103 = vadd.f32 %v1102, %v1008
        %v1104 = vadd.f32 %v1103, %v1009
        %v1105 = vadd.f32 %v1104, %v1010
        %v1106 = vadd.f32 %v1105, %v1011
        %v1107 = vadd.f32 %v1106, %v1012
        %v1108 = vadd.f32 %v1107, %v1013
        %v1109 = vadd.f32 %v1108, %v1014
        %v1110 = vadd.f32 %v1109, %v1015
        %v1111 = vadd.f32 %v1110, %v1016
        %v1112 = vadd.f32 %v1111, %v1017
        %v1113 = vadd.f32 %v1112, %v1018
        %v1114 = vadd.f32 %v1113, %v1019
        %v1115 = vadd.f32 %v1114, %v1020
        %v1116 = vadd.f32 %v1115, %v1021
        %v1117 = vadd.f32 %v1116, %v1022
        %v1118 = vadd.f32 %v1117, %v1023
        %v1119 = vadd.f32 %v1118, %v1024
        %v1120 = vadd.f32 %v1119, %v1025
        %v1121 = vadd.f32 %v1120, %v1026
        %v1122 = vadd.f32 %v1121, %v1027
        %v1123 = vadd.f32 %v1122, %v1028
        %v1124 = vadd.f32 %v1123, %v1029
        %v1125 = vadd.f32 %v1124, %v1030
        %v1126 = vadd.f32 %v1125, %v1031
        %v1127 = vadd.f32 %v1126, %v1032
        %v1128 = vadd.f32 %v1127, %v1033
        %v1129 = vadd.f32 %v1128, %v1034
        %v1130 = vadd.f32 %v1129, %v1035
        %v1131 = vadd.f32 %v1130, %v1036
        %v1132 = vadd.f32 %v1131, %v1037
        %v1133 = vadd.f32 %v1132, %v1038
        %v1134 = vadd.f32 %v1133, %v1039
        %v1135 = vadd.f32 %v1134, %v1040
        %v1136 = vadd.f32 %v1135, %v1041
        %v1137 = vadd.f32 %v1136, %v1042
        %v1138 = vadd.f32 %v1137, %v1043
        %v1139 = vadd.f32 %v1138, %v1044
        %v1140 = vadd.f32 %v1139, %v1045
        %v1141 = vadd.f32 %v1140, %v1046
        %v1142 = vadd.f32 %v1141, %v1047
        %v1143 = vadd.f32 %v1142, %v1048
        %v1144 = vadd.f32 %v1143, %v1049
        %v1145 = vadd.f32 %v1144, %v1050
        %v1146 = vadd.f32 %v1145, %v1051
        %v1147 = vadd.f32 %v1146, %v1052
        %v1148 = vadd.f32 %v1147, %v1053
        %v1149 = vadd.f32 %v1148, %v1054
        %v1150 = vadd.f32 %v1149, %v1055
        %v1151 = vadd.f32 %v1150, %v1056
        %v1152 = vadd.f32 %v1151, %v1057
        %v1153 = vadd.f32 %v1152, %v1058
        %v1154 = vadd.f32 %v1153, %v1059
        %v1155 = vadd.f32 %v1154, %v1060
        %v1156 = vadd.f32 %v1155, %v1061
        %v1157 = vadd.f32 %v1156, %v1062
        %v1158 = vadd.f32 %v1157, %v1063
        %v1159 = vadd.f32 %v1158, %v1064
        %v1160 = vadd.f32 %v1159, %v1065
        %v1161 = vadd.f32 %v1160, %v1066
        %v1162 = vadd.f32 %v1161, %v1067
        %v1163 = vadd.f32 %v1162, %v1068
        %v1164 = vadd.f32 %v1163, %v1069
        %v1165 = vadd.f32 %v1164, %v1070
        %v1166 = vadd.f32 %v1165, %v1071
        %v1167 = vadd.f32 %v1166, %v1072
        %v1168 = vadd.f32 %v1167, %v1073
        %v1169 = vadd.f32 %v1168, %v1074
        %v1170 = vadd.f32 %v1169, %v1075
        %v1171 = vadd.f32 %v1170, %v1076
        %v1172 = vadd.f32 %v1171, %v1077
        %v1173 = vadd.f32 %v1172, %v1078
        %v1174 = vadd.f32 %v1173, %v1079
        %v1175 = vadd.f32 %v1174, %v1080
        %v1176 = vadd.f32 %v1175, %v1081
        %v1177 = vadd.f32 %v1176, %v1082
        %v1178 = vadd.f32 %v1177, %v1083
        %v1179 = vadd.f32 %v1178, %v1084
        %v1180 = vadd.f32 %v1179, %v1085
        %v1181 = vadd.f32 %v1180, %v1086
        %v1182 = vadd.f32 %v1181, %v1087
        %v1183 = vadd.f32 %v1182, %v1088
        %v1184 = vadd.f32 %v1183, %v1089
        %v1185 = vadd.f32 %v1184, %v1090
        %1186 = vadd.xlane.f32.xlu0 %v1185
        %v1187 = vpop.xlane.xlu0 %1186
        %v1188 = vrot.slane %v1187, 4
        %v1189 = vadd.f32 %v1187, %v1188
        %v1190 = vrot.slane %v1189, 2
        %v1191 = vadd.f32 %v1189, %v1190
        %v1192 = vrot.slane %v1191, 1
        %v1193 = vadd.f32 %v1191, %v1192
        %s1194 = vtos %v1193
        %v1195 = vstv %s1194
        %v1196 = vadd.f32 %v706, %v1195
        %1197 = vst [vmem:[%s680] sm:$0xff] %v1196
        loop: start=0, step=1, limit=256
        $region81: #{mono4dgs_loss.1} parent=51 // loop_pre_header
          _
        $region82: #{mono4dgs_loss.1} parent=51 // loop_header
          %s1199 = sphi 0, %s1203
          %p1200 = scmp.ge.s32.totalorder %s1199, 256
          %s1204 = sphi 0.0, %s1403
          %s1205 = sphi 0.0, %s1414
        $region83: #{mono4dgs_loss.1} parent=51 // loop_header_branch
          %1202 = sbr.rel (%p1200) target = $region87
        $region84: #{mono4dgs_loss.1} parent=51 // loop_body
          %s1206 = scalar_lea.vmem %s564, %s1199 [#allocation6]
          %v1207 = vld [vmem:[%s1206] sm:$0x1]
          %s1208 = scalar_lea.vmem %s573, %s1199 [#allocation7]
          %v1209 = vld [vmem:[%s1208] sm:$0x1]
          %s1210 = scalar_lea.vmem %s582, %s1199 [#allocation9]
          %v1211 = vld [vmem:[%s1210] sm:$0x1]
          %vm1212 = vcmp.gt.f32.partialorder %v1211, 0.1
          %vm1213 = vcmp.gt.f32.partialorder %v1209, 0.0
          %vm1214 = vmand %vm1212, %vm1213
          %vm1215 = vcmp.lt.f32.partialorder %v1209, 100.0
          %vm1216 = vmand %vm1214, %vm1215
          %vm1217 = vcmp.ge.s32.totalorder %v1207, 0
          %vm1218 = vmand %vm1216, %vm1217
          %v1219 = vsel %vm1218, 1, 0
          %v1220 = vcvt.s32.f32 %v1219
          %v1221 = vmul.f32 %v1211, %v1220
          loop: start=0, step=1, limit=2
          $region88: #{mono4dgs_loss.1} parent=84 // loop_pre_header
            _
          $region89: #{mono4dgs_loss.1} parent=84 // loop_header
            %s1223 = sphi 0, %s1227
            %p1224 = scmp.ge.s32.totalorder %s1223, 2
            %v1228 = vphi 0.0, %v1388
          $region90: #{mono4dgs_loss.1} parent=84 // loop_header_branch
            %1226 = sbr.rel (%p1224) target = $region94
          $region91: #{mono4dgs_loss.1} parent=84 // loop_body
            %s1229 = smul.u32 %s1223, 128
            %v1230 = vlaneseq
            %v1231 = vshrl.u32 %v1230, 7
            %v1232 = vadd.s32 %v1231, 8
            %v1233 = vadd.s32 %v1231, 16
            %v1234 = vadd.s32 %v1231, 24
            %v1235 = vadd.s32 %v1231, 32
            %v1236 = vadd.s32 %v1231, 40
            %v1237 = vadd.s32 %v1231, 48
            %v1238 = vadd.s32 %v1231, 56
            %v1239 = vadd.s32 %v1231, 64
            %v1240 = vadd.s32 %v1231, 72
            %v1241 = vadd.s32 %v1231, 80
            %v1242 = vadd.s32 %v1231, 88
            %v1243 = vadd.s32 %v1231, 96
            %v1244 = vadd.s32 %v1231, 104
            %v1245 = vadd.s32 %v1231, 112
            %v1246 = vadd.s32 %v1231, 120
            %v1247 = vstv %s1229
            %v1248 = vadd.s32 %v1231, %v1247
            %v1249 = vadd.s32 %v1232, %v1247
            %v1250 = vadd.s32 %v1233, %v1247
            %v1251 = vadd.s32 %v1234, %v1247
            %v1252 = vadd.s32 %v1235, %v1247
            %v1253 = vadd.s32 %v1236, %v1247
            %v1254 = vadd.s32 %v1237, %v1247
            %v1255 = vadd.s32 %v1238, %v1247
            %v1256 = vadd.s32 %v1239, %v1247
            %v1257 = vadd.s32 %v1240, %v1247
            %v1258 = vadd.s32 %v1241, %v1247
            %v1259 = vadd.s32 %v1242, %v1247
            %v1260 = vadd.s32 %v1243, %v1247
            %v1261 = vadd.s32 %v1244, %v1247
            %v1262 = vadd.s32 %v1245, %v1247
            %v1263 = vadd.s32 %v1246, %v1247
            %v1264 = vlaneseq
            %v1265 = vshrl.u32 %v1264, 7
            %v1266 = vsub.s32 0, %v1265
            %v1267 = vrot.slane %v1207, %v1266
            %vm1268 = vcmp.eq.s32.totalorder %v1248, %v1267
            %vm1269 = vcmp.eq.s32.totalorder %v1249, %v1267
            %vm1270 = vcmp.eq.s32.totalorder %v1250, %v1267
            %vm1271 = vcmp.eq.s32.totalorder %v1251, %v1267
            %vm1272 = vcmp.eq.s32.totalorder %v1252, %v1267
            %vm1273 = vcmp.eq.s32.totalorder %v1253, %v1267
            %vm1274 = vcmp.eq.s32.totalorder %v1254, %v1267
            %vm1275 = vcmp.eq.s32.totalorder %v1255, %v1267
            %vm1276 = vcmp.eq.s32.totalorder %v1256, %v1267
            %vm1277 = vcmp.eq.s32.totalorder %v1257, %v1267
            %vm1278 = vcmp.eq.s32.totalorder %v1258, %v1267
            %vm1279 = vcmp.eq.s32.totalorder %v1259, %v1267
            %vm1280 = vcmp.eq.s32.totalorder %v1260, %v1267
            %vm1281 = vcmp.eq.s32.totalorder %v1261, %v1267
            %vm1282 = vcmp.eq.s32.totalorder %v1262, %v1267
            %vm1283 = vcmp.eq.s32.totalorder %v1263, %v1267
            %v1284 = vsel %vm1268, 1, 0
            %v1285 = vsel %vm1269, 1, 0
            %v1286 = vsel %vm1270, 1, 0
            %v1287 = vsel %vm1271, 1, 0
            %v1288 = vsel %vm1272, 1, 0
            %v1289 = vsel %vm1273, 1, 0
            %v1290 = vsel %vm1274, 1, 0
            %v1291 = vsel %vm1275, 1, 0
            %v1292 = vsel %vm1276, 1, 0
            %v1293 = vsel %vm1277, 1, 0
            %v1294 = vsel %vm1278, 1, 0
            %v1295 = vsel %vm1279, 1, 0
            %v1296 = vsel %vm1280, 1, 0
            %v1297 = vsel %vm1281, 1, 0
            %v1298 = vsel %vm1282, 1, 0
            %v1299 = vsel %vm1283, 1, 0
            %v1300 = vcvt.s32.f32 %v1284
            %v1301 = vcvt.s32.f32 %v1285
            %v1302 = vcvt.s32.f32 %v1286
            %v1303 = vcvt.s32.f32 %v1287
            %v1304 = vcvt.s32.f32 %v1288
            %v1305 = vcvt.s32.f32 %v1289
            %v1306 = vcvt.s32.f32 %v1290
            %v1307 = vcvt.s32.f32 %v1291
            %v1308 = vcvt.s32.f32 %v1292
            %v1309 = vcvt.s32.f32 %v1293
            %v1310 = vcvt.s32.f32 %v1294
            %v1311 = vcvt.s32.f32 %v1295
            %v1312 = vcvt.s32.f32 %v1296
            %v1313 = vcvt.s32.f32 %v1297
            %v1314 = vcvt.s32.f32 %v1298
            %v1315 = vcvt.s32.f32 %v1299
            %s1316 = scalar_lea.vmem %s5, %s1223
            %v1317 = vld [vmem:[%s1316] sm:$0x1]
            %1318 = vmatprep.subr.mxu0 0.0
            %1319 = vmatpush1.msra.mxu0 %v1300
            %1320 = vmatprep.subr.mxu0 0.0
            %1321 = vmatpush1.msra.mxu0 %v1301
            %1322 = vmatprep.subr.mxu0 0.0
            %1323 = vmatpush1.msra.mxu0 %v1302
            %1324 = vmatprep.subr.mxu0 0.0
            %1325 = vmatpush1.msra.mxu0 %v1303
            %1326 = vmatprep.subr.mxu0 0.0
            %1327 = vmatpush1.msra.mxu0 %v1304
            %1328 = vmatprep.subr.mxu0 0.0
            %1329 = vmatpush1.msra.mxu0 %v1305
            %1330 = vmatprep.subr.mxu0 0.0
            %1331 = vmatpush1.msra.mxu0 %v1306
            %1332 = vmatprep.subr.mxu0 0.0
            %1333 = vmatpush1.msra.mxu0 %v1307
            %1334 = vmatprep.subr.mxu0 0.0
            %1335 = vmatpush1.msra.mxu0 %v1308
            %1336 = vmatprep.subr.mxu0 0.0
            %1337 = vmatpush1.msra.mxu0 %v1309
            %1338 = vmatprep.subr.mxu0 0.0
            %1339 = vmatpush1.msra.mxu0 %v1310
            %1340 = vmatprep.subr.mxu0 0.0
            %1341 = vmatpush1.msra.mxu0 %v1311
            %1342 = vmatprep.subr.mxu0 0.0
            %1343 = vmatpush1.msra.mxu0 %v1312
            %1344 = vmatprep.subr.mxu0 0.0
            %1345 = vmatpush1.msra.mxu0 %v1313
            %1346 = vmatprep.subr.mxu0 0.0
            %1347 = vmatpush1.msra.mxu0 %v1314
            %1348 = vmatprep.subr.mxu0 0.0
            %1349 = vmatpush1.msra.mxu0 %v1315
            %1350 = vmatprep.subr.mxu0 0.0
            %1351 = vmatpush1.msra.mxu0 0.0
            %1352 = vmatprep.subr.mxu0 0.0
            %1353 = vmatpush1.msra.mxu0 0.0
            %1354 = vmatprep.subr.mxu0 0.0
            %1355 = vmatpush1.msra.mxu0 0.0
            %1356 = vmatprep.subr.mxu0 0.0
            %1357 = vmatpush1.msra.mxu0 0.0
            %1358 = vmatprep.subr.mxu0 0.0
            %1359 = vmatpush1.msra.mxu0 0.0
            %1360 = vmatprep.subr.mxu0 0.0
            %1361 = vmatpush1.msra.mxu0 0.0
            %1362 = vmatprep.subr.mxu0 0.0
            %1363 = vmatpush1.msra.mxu0 0.0
            %1364 = vmatprep.subr.mxu0 0.0
            %1365 = vmatpush1.msra.mxu0 0.0
            %1366 = vmatprep.subr.mxu0 0.0
            %1367 = vmatpush1.msra.mxu0 0.0
            %1368 = vmatprep.subr.mxu0 0.0
            %1369 = vmatpush1.msra.mxu0 0.0
            %1370 = vmatprep.subr.mxu0 0.0
            %1371 = vmatpush1.msra.mxu0 0.0
            %1372 = vmatprep.subr.mxu0 0.0
            %1373 = vmatpush1.msra.mxu0 0.0
            %1374 = vmatprep.subr.mxu0 0.0
            %1375 = vmatpush1.msra.mxu0 0.0
            %1376 = vmatprep.subr.mxu0 0.0
            %1377 = vmatpush1.msra.mxu0 0.0
            %1378 = vmatprep.subr.mxu0 0.0
            %1379 = vmatpush1.msra.mxu0 0.0
            %1380 = vmatprep.subr.mxu0 0.0
            %1381 = vmatpush1.msra.mxu0 0.0
            %1382 = vmatprep.mubr.f32.mxu0 0.0
            %1383 = vmatmul.mubr.f32.gmra.mrb[0].mxu0 %v1317
            %v1384 = vpop.f32.mrb[0].mxu0
            %v1385 = vadd.f32 0.0, %v1384
            %v1386 = vpop.f32.mrb[0].mxu0
            %1387 = vdwg.mxu0
            %v1388 = vadd.f32 %v1228, %v1385
          $region92: #{mono4dgs_loss.1} parent=84 // loop_footer
            %s1227 = sadd.s32 1, %s1223
          $region93: #{mono4dgs_loss.1} parent=84 // loop_footer_branch
            %1222 = sbr.rel target = $region89
          $region94: #{mono4dgs_loss.1} parent=84 // loop_exit
            _
          %v1389 = vsub.f32 %v1228, %v1209
          %v1390 = vand.u32 2147483647, %v1389
          %v1391 = vmul.f32 %v1221, %v1390
          %vm1392 = vcmask 1040384
          %v1393 = vsel %vm1392, %v1391, 0.0
          %1394 = vadd.xlane.f32.xlu0 %v1393
          %v1395 = vpop.xlane.xlu0 %1394
          %v1396 = vrot.slane %v1395, 4
          %v1397 = vadd.f32 %v1395, %v1396
          %v1398 = vrot.slane %v1397, 2
          %v1399 = vadd.f32 %v1397, %v1398
          %v1400 = vrot.slane %v1399, 1
          %v1401 = vadd.f32 %v1399, %v1400
          %s1402 = vtos %v1401
          %s1403 = sadd.f32 %s1204, %s1402
          %v1404 = vsel %vm1392, %v1221, 0.0
          %1405 = vadd.xlane.f32.xlu0 %v1404
          %v1406 = vpop.xlane.xlu0 %1405
          %v1407 = vrot.slane %v1406, 4
          %v1408 = vadd.f32 %v1406, %v1407
          %v1409 = vrot.slane %v1408, 2
          %v1410 = vadd.f32 %v1408, %v1409
          %v1411 = vrot.slane %v1410, 1
          %v1412 = vadd.f32 %v1410, %v1411
          %s1413 = vtos %v1412
          %s1414 = sadd.f32 %s1205, %s1413
        $region85: #{mono4dgs_loss.1} parent=51 // loop_footer
          %s1203 = sadd.s32 1, %s1199
        $region86: #{mono4dgs_loss.1} parent=51 // loop_footer_branch
          %1198 = sbr.rel target = $region82
        $region87: #{mono4dgs_loss.1} parent=51 // loop_exit
          _
        %v1415 = vld [vmem:[%s684] sm:$0xff]
        %v1416 = vstv %s1204
        %v1417 = vadd.f32 %v1415, %v1416
        %1418 = vst [vmem:[%s684] sm:$0xff] %v1417
        %v1419 = vld [vmem:[%s688] sm:$0xff]
        %v1420 = vstv %s1205
        %v1421 = vadd.f32 %v1419, %v1420
        %1422 = vst [vmem:[%s688] sm:$0xff] %v1421
        %p1423 = scmp.eq.s32.totalorder %s38, 0
        %p1424 = pnand %p1423, %p697
        %p1425 = pneg %p1424
        // Predicated region
        $region95: #{mono4dgs_loss.1} parent=51 // pred_check
          _
        $region96: #{mono4dgs_loss.1} parent=51 // pred_check_branch
          %1427 = sbr.rel (%p1424) target = $region98
        $region97: #{mono4dgs_loss.1} parent=51 // pred_region
          %v1428 = vld [vmem:[#allocation10] sm:$0x77]
          %v1429 = vld [vmem:[%s7] sm:$0xff]
          %v1430 = vld [vmem:[%s7 + $0x8] sm:$0xff]
          %v1431 = vld [vmem:[%s7 + $0x10] sm:$0xff]
          %v1432 = vld [vmem:[%s7 + $0x18] sm:$0xff]
          %v1433 = vld [vmem:[%s7 + $0x20] sm:$0xff]
          %v1434 = vld [vmem:[%s7 + $0x28] sm:$0xff]
          %1436 = vset.pattern.permute.xlu0 0
          %1437 = vperm.xlu0 %1436, %v1429
          %v1438 = vpop.permute.xlu0 %1437
          %1441 = vset.pattern.permute.xlu0 0
          %1442 = vperm.xlu0 %1441, %v1430
          %v1443 = vpop.permute.xlu0 %1442
          %1446 = vset.pattern.permute.xlu0 0
          %1447 = vperm.xlu0 %1446, %v1431
          %v1448 = vpop.permute.xlu0 %1447
          %1451 = vset.pattern.permute.xlu0 0
          %1452 = vperm.xlu0 %1451, %v1432
          %v1453 = vpop.permute.xlu0 %1452
          %1456 = vset.pattern.permute.xlu0 0
          %1457 = vperm.xlu0 %1456, %v1433
          %v1458 = vpop.permute.xlu0 %1457
          %1461 = vset.pattern.permute.xlu0 0
          %1462 = vperm.xlu0 %1461, %v1434
          %v1463 = vpop.permute.xlu0 %1462
          %v1466 = vlaneseq
          %v1467 = vshrl.u32 %v1466, 7
          %v1468 = vsub.s32 0, %v1467
          %v1469 = vrot.slane %v1428, %v1468
          %v1470 = vlaneseq
          %v1471 = vshrl.u32 %v1470, 7
          %v1472 = vsub.s32 4, %v1471
          %v1473 = vrot.slane %v1428, %v1472
          %v1476 = vlaneseq
          %v1477 = vshrl.u32 %v1476, 7
          %v1478 = vsub.s32 0, %v1477
          %v1479 = vrot.slane %v1469, %v1478
          %v1480 = vlaneseq
          %v1481 = vshrl.u32 %v1480, 7
          %v1482 = vsub.s32 0, %v1481
          %v1483 = vrot.slane %v1473, %v1482
          %v1484 = vsub.f32 %v1438, %v1479
          %v1485 = vsub.f32 %v1438, %v1483
          %v1486 = vsub.f32 %v1443, %v1479
          %v1487 = vsub.f32 %v1443, %v1483
          %v1488 = vsub.f32 %v1448, %v1479
          %v1489 = vsub.f32 %v1448, %v1483
          %v1490 = vsub.f32 %v1453, %v1479
          %v1491 = vsub.f32 %v1453, %v1483
          %v1492 = vsub.f32 %v1458, %v1479
          %v1493 = vsub.f32 %v1458, %v1483
          %v1494 = vsub.f32 %v1463, %v1479
          %v1495 = vsub.f32 %v1463, %v1483
          %v1496 = vmul.f32 %v1484, %v1484
          %v1497 = vmul.f32 %v1485, %v1485
          %v1498 = vmul.f32 %v1486, %v1486
          %v1499 = vmul.f32 %v1487, %v1487
          %v1500 = vmul.f32 %v1488, %v1488
          %v1501 = vmul.f32 %v1489, %v1489
          %v1502 = vmul.f32 %v1490, %v1490
          %v1503 = vmul.f32 %v1491, %v1491
          %v1504 = vmul.f32 %v1492, %v1492
          %v1505 = vmul.f32 %v1493, %v1493
          %v1506 = vmul.f32 %v1494, %v1494
          %v1507 = vmul.f32 %v1495, %v1495
          %1508 = vset.pattern.permute.xlu0 1
          %1509 = vperm.xlu0 %1508, %v1429
          %v1510 = vpop.permute.xlu0 %1509
          %1512 = vset.pattern.permute.xlu0 1
          %1513 = vperm.xlu0 %1512, %v1430
          %v1514 = vpop.permute.xlu0 %1513
          %1516 = vset.pattern.permute.xlu0 1
          %1517 = vperm.xlu0 %1516, %v1431
          %v1518 = vpop.permute.xlu0 %1517
          %1520 = vset.pattern.permute.xlu0 1
          %1521 = vperm.xlu0 %1520, %v1432
          %v1522 = vpop.permute.xlu0 %1521
          %1524 = vset.pattern.permute.xlu0 1
          %1525 = vperm.xlu0 %1524, %v1433
          %v1526 = vpop.permute.xlu0 %1525
          %1528 = vset.pattern.permute.xlu0 1
          %1529 = vperm.xlu0 %1528, %v1434
          %v1530 = vpop.permute.xlu0 %1529
          %v1532 = vlaneseq
          %v1533 = vshrl.u32 %v1532, 7
          %v1534 = vsub.s32 1, %v1533
          %v1535 = vrot.slane %v1428, %v1534
          %v1536 = vlaneseq
          %v1537 = vshrl.u32 %v1536, 7
          %v1538 = vsub.s32 5, %v1537
          %v1539 = vrot.slane %v1428, %v1538
          %v1542 = vlaneseq
          %v1543 = vshrl.u32 %v1542, 7
          %v1544 = vsub.s32 1, %v1543
          %v1545 = vrot.slane %v1535, %v1544
          %v1546 = vlaneseq
          %v1547 = vshrl.u32 %v1546, 7
          %v1548 = vsub.s32 1, %v1547
          %v1549 = vrot.slane %v1539, %v1548
          %v1550 = vsub.f32 %v1510, %v1545
          %v1551 = vsub.f32 %v1510, %v1549
          %v1552 = vsub.f32 %v1514, %v1545
          %v1553 = vsub.f32 %v1514, %v1549
          %v1554 = vsub.f32 %v1518, %v1545
          %v1555 = vsub.f32 %v1518, %v1549
          %v1556 = vsub.f32 %v1522, %v1545
          %v1557 = vsub.f32 %v1522, %v1549
          %v1558 = vsub.f32 %v1526, %v1545
          %v1559 = vsub.f32 %v1526, %v1549
          %v1560 = vsub.f32 %v1530, %v1545
          %v1561 = vsub.f32 %v1530, %v1549
          %v1562 = vmul.f32 %v1550, %v1550
          %v1563 = vmul.f32 %v1551, %v1551
          %v1564 = vmul.f32 %v1552, %v1552
          %v1565 = vmul.f32 %v1553, %v1553
          %v1566 = vmul.f32 %v1554, %v1554
          %v1567 = vmul.f32 %v1555, %v1555
          %v1568 = vmul.f32 %v1556, %v1556
          %v1569 = vmul.f32 %v1557, %v1557
          %v1570 = vmul.f32 %v1558, %v1558
          %v1571 = vmul.f32 %v1559, %v1559
          %v1572 = vmul.f32 %v1560, %v1560
          %v1573 = vmul.f32 %v1561, %v1561
          %v1574 = vadd.f32 %v1496, %v1562
          %v1575 = vadd.f32 %v1497, %v1563
          %v1576 = vadd.f32 %v1498, %v1564
          %v1577 = vadd.f32 %v1499, %v1565
          %v1578 = vadd.f32 %v1500, %v1566
          %v1579 = vadd.f32 %v1501, %v1567
          %v1580 = vadd.f32 %v1502, %v1568
          %v1581 = vadd.f32 %v1503, %v1569
          %v1582 = vadd.f32 %v1504, %v1570
          %v1583 = vadd.f32 %v1505, %v1571
          %v1584 = vadd.f32 %v1506, %v1572
          %v1585 = vadd.f32 %v1507, %v1573
          %1586 = vset.pattern.permute.xlu0 2
          %1587 = vperm.xlu0 %1586, %v1429
          %v1588 = vpop.permute.xlu0 %1587
          %1590 = vset.pattern.permute.xlu0 2
          %1591 = vperm.xlu0 %1590, %v1430
          %v1592 = vpop.permute.xlu0 %1591
          %1594 = vset.pattern.permute.xlu0 2
          %1595 = vperm.xlu0 %1594, %v1431
          %v1596 = vpop.permute.xlu0 %1595
          %1598 = vset.pattern.permute.xlu0 2
          %1599 = vperm.xlu0 %1598, %v1432
          %v1600 = vpop.permute.xlu0 %1599
          %1602 = vset.pattern.permute.xlu0 2
          %1603 = vperm.xlu0 %1602, %v1433
          %v1604 = vpop.permute.xlu0 %1603
          %1606 = vset.pattern.permute.xlu0 2
          %1607 = vperm.xlu0 %1606, %v1434
          %v1608 = vpop.permute.xlu0 %1607
          %v1610 = vlaneseq
          %v1611 = vshrl.u32 %v1610, 7
          %v1612 = vsub.s32 2, %v1611
          %v1613 = vrot.slane %v1428, %v1612
          %v1614 = vlaneseq
          %v1615 = vshrl.u32 %v1614, 7
          %v1616 = vsub.s32 6, %v1615
          %v1617 = vrot.slane %v1428, %v1616
          %v1620 = vlaneseq
          %v1621 = vshrl.u32 %v1620, 7
          %v1622 = vsub.s32 2, %v1621
          %v1623 = vrot.slane %v1613, %v1622
          %v1624 = vlaneseq
          %v1625 = vshrl.u32 %v1624, 7
          %v1626 = vsub.s32 2, %v1625
          %v1627 = vrot.slane %v1617, %v1626
          %v1628 = vsub.f32 %v1588, %v1623
          %v1629 = vsub.f32 %v1588, %v1627
          %v1630 = vsub.f32 %v1592, %v1623
          %v1631 = vsub.f32 %v1592, %v1627
          %v1632 = vsub.f32 %v1596, %v1623
          %v1633 = vsub.f32 %v1596, %v1627
          %v1634 = vsub.f32 %v1600, %v1623
          %v1635 = vsub.f32 %v1600, %v1627
          %v1636 = vsub.f32 %v1604, %v1623
          %v1637 = vsub.f32 %v1604, %v1627
          %v1638 = vsub.f32 %v1608, %v1623
          %v1639 = vsub.f32 %v1608, %v1627
          %v1640 = vmul.f32 %v1628, %v1628
          %v1641 = vmul.f32 %v1629, %v1629
          %v1642 = vmul.f32 %v1630, %v1630
          %v1643 = vmul.f32 %v1631, %v1631
          %v1644 = vmul.f32 %v1632, %v1632
          %v1645 = vmul.f32 %v1633, %v1633
          %v1646 = vmul.f32 %v1634, %v1634
          %v1647 = vmul.f32 %v1635, %v1635
          %v1648 = vmul.f32 %v1636, %v1636
          %v1649 = vmul.f32 %v1637, %v1637
          %v1650 = vmul.f32 %v1638, %v1638
          %v1651 = vmul.f32 %v1639, %v1639
          %v1652 = vadd.f32 %v1574, %v1640
          %v1653 = vadd.f32 %v1575, %v1641
          %v1654 = vadd.f32 %v1576, %v1642
          %v1655 = vadd.f32 %v1577, %v1643
          %v1656 = vadd.f32 %v1578, %v1644
          %v1657 = vadd.f32 %v1579, %v1645
          %v1658 = vadd.f32 %v1580, %v1646
          %v1659 = vadd.f32 %v1581, %v1647
          %v1660 = vadd.f32 %v1582, %v1648
          %v1661 = vadd.f32 %v1583, %v1649
          %v1662 = vadd.f32 %v1584, %v1650
          %v1663 = vadd.f32 %v1585, %v1651
          %vm1664 = vcmask 588800
          %v1665 = vsel %vm1664, %v1653, inf
          %v1666 = vmin.f32 %v1652, %v1665
          %1667 = vmin.xlane.f32.xlu0 %v1666
          %v1668 = vpop.xlane.xlu0 %1667
          %v1669 = vsel %vm1664, %v1655, inf
          %v1670 = vmin.f32 %v1654, %v1669
          %1671 = vmin.xlane.f32.xlu0 %v1670
          %v1672 = vpop.xlane.xlu0 %1671
          %v1673 = vsel %vm1664, %v1657, inf
          %v1674 = vmin.f32 %v1656, %v1673
          %1675 = vmin.xlane.f32.xlu0 %v1674
          %v1676 = vpop.xlane.xlu0 %1675
          %v1677 = vsel %vm1664, %v1659, inf
          %v1678 = vmin.f32 %v1658, %v1677
          %1679 = vmin.xlane.f32.xlu0 %v1678
          %v1680 = vpop.xlane.xlu0 %1679
          %v1681 = vsel %vm1664, %v1661, inf
          %v1682 = vmin.f32 %v1660, %v1681
          %1683 = vmin.xlane.f32.xlu0 %v1682
          %v1684 = vpop.xlane.xlu0 %1683
          %v1685 = vsel %vm1664, %v1663, inf
          %v1686 = vmin.f32 %v1662, %v1685
          %1687 = vmin.xlane.f32.xlu0 %v1686
          %v1688 = vpop.xlane.xlu0 %1687
          %vm1689 = vcmp.lt.f32.partialorder %v1668, 1.0
          %vm1690 = vcmp.lt.f32.partialorder %v1672, 1.0
          %vm1691 = vcmp.lt.f32.partialorder %v1676, 1.0
          %vm1692 = vcmp.lt.f32.partialorder %v1680, 1.0
          %vm1693 = vcmp.lt.f32.partialorder %v1684, 1.0
          %vm1694 = vcmp.lt.f32.partialorder %v1688, 1.0
          %v1695 = vsel %vm1689, 1, 0
          %v1696 = vsel %vm1690, 1, 0
          %v1697 = vsel %vm1691, 1, 0
          %v1698 = vsel %vm1692, 1, 0
          %v1699 = vsel %vm1693, 1, 0
          %v1700 = vsel %vm1694, 1, 0
          %v1701 = vcvt.s32.f32 %v1695
          %v1702 = vcvt.s32.f32 %v1696
          %v1703 = vcvt.s32.f32 %v1697
          %v1704 = vcvt.s32.f32 %v1698
          %v1705 = vcvt.s32.f32 %v1699
          %v1706 = vcvt.s32.f32 %v1700
          %v1707 = vld [vmem:[%s692] sm:$0xff]
          %v1708 = vmul.f32 %v1668, %v1701
          %v1709 = vmul.f32 %v1672, %v1702
          %v1710 = vmul.f32 %v1676, %v1703
          %v1711 = vmul.f32 %v1680, %v1704
          %v1712 = vmul.f32 %v1684, %v1705
          %v1713 = vmul.f32 %v1688, %v1706
          %vm1714 = vcmask 7168
          %v1715 = vsel %vm1714, %v1708, 0.0
          %v1716 = vsel %vm1714, %v1709, 0.0
          %v1717 = vadd.f32 %v1715, %v1716
          %v1718 = vsel %vm1714, %v1710, 0.0
          %v1719 = vadd.f32 %v1717, %v1718
          %v1720 = vsel %vm1714, %v1711, 0.0
          %v1721 = vadd.f32 %v1719, %v1720
          %v1722 = vsel %vm1714, %v1712, 0.0
          %v1723 = vadd.f32 %v1721, %v1722
          %v1724 = vsel %vm1714, %v1713, 0.0
          %v1725 = vadd.f32 %v1723, %v1724
          %1726 = vadd.xlane.f32.xlu0 %v1725
          %v1727 = vpop.xlane.xlu0 %1726
          %v1728 = vrot.slane %v1727, 4
          %v1729 = vadd.f32 %v1727, %v1728
          %v1730 = vrot.slane %v1729, 2
          %v1731 = vadd.f32 %v1729, %v1730
          %v1732 = vrot.slane %v1731, 1
          %v1733 = vadd.f32 %v1731, %v1732
          %s1734 = vtos %v1733
          %v1735 = vstv %s1734
          %v1736 = vadd.f32 %v1707, %v1735
          %1737 = vst [vmem:[%s692] sm:$0xff] %v1736
          %v1738 = vld [vmem:[%s696] sm:$0xff]
          %v1739 = vsel %vm1714, %v1701, 0.0
          %v1740 = vsel %vm1714, %v1702, 0.0
          %v1741 = vadd.f32 %v1739, %v1740
          %v1742 = vsel %vm1714, %v1703, 0.0
          %v1743 = vadd.f32 %v1741, %v1742
          %v1744 = vsel %vm1714, %v1704, 0.0
          %v1745 = vadd.f32 %v1743, %v1744
          %v1746 = vsel %vm1714, %v1705, 0.0
          %v1747 = vadd.f32 %v1745, %v1746
          %v1748 = vsel %vm1714, %v1706, 0.0
          %v1749 = vadd.f32 %v1747, %v1748
          %1750 = vadd.xlane.f32.xlu0 %v1749
          %v1751 = vpop.xlane.xlu0 %1750
          %v1752 = vrot.slane %v1751, 4
          %v1753 = vadd.f32 %v1751, %v1752
          %v1754 = vrot.slane %v1753, 2
          %v1755 = vadd.f32 %v1753, %v1754
          %v1756 = vrot.slane %v1755, 1
          %v1757 = vadd.f32 %v1755, %v1756
          %s1758 = vtos %v1757
          %v1759 = vstv %s1758
          %v1760 = vadd.f32 %v1738, %v1759
          %1761 = vst [vmem:[%s696] sm:$0xff] %v1760
        $region98: #{mono4dgs_loss.1} parent=51 // pred_fallthru
          _
        %p1762 = scmp.lt.s32.totalorder %s38, 1
        %s1763 = scalar_select %p1762, %s38, 1
        %s1764 = smul.addr %s1763, 8
        %s1765 = scalar_lea.vmem %s8, %s1764
        %p1766 = scmp.lt.s32.totalorder %s38, 1
        %s1767 = scalar_select %p1766, %s38, 1
        %s1768 = smul.addr %s1767, 8
        %s1769 = scalar_lea.vmem %s9, %s1768
        %p1770 = scmp.lt.s32.totalorder %s38, 1
        %s1771 = scalar_select %p1770, %s38, 1
        %s1772 = smul.addr %s1771, 8
        %s1773 = scalar_lea.vmem %s10, %s1772
        %p1774 = scmp.lt.s32.totalorder %s38, 1
        %s1775 = scalar_select %p1774, %s38, 1
        %s1776 = smul.addr %s1775, 8
        %s1777 = scalar_lea.vmem %s11, %s1776
        %p1778 = scmp.lt.s32.totalorder %s38, 1
        %s1779 = scalar_select %p1778, %s38, 1
        %s1780 = smul.addr %s1779, 8
        %s1781 = scalar_lea.vmem %s12, %s1780
        // Predicated region
        $region99: #{mono4dgs_loss.1} parent=51 // pred_check
          %p1782 = pneg %p277
        $region100: #{mono4dgs_loss.1} parent=51 // pred_check_branch
          %1784 = sbr.rel (%p1782) target = $region102
        $region101: #{mono4dgs_loss.1} parent=51 // pred_region
          _
        $region102: #{mono4dgs_loss.1} parent=51 // pred_fallthru
          _
        // Predicated region
        $region103: #{mono4dgs_loss.1} parent=51 // pred_check
          %p1785 = pneg %p303
        $region104: #{mono4dgs_loss.1} parent=51 // pred_check_branch
          %1787 = sbr.rel (%p1785) target = $region106
        $region105: #{mono4dgs_loss.1} parent=51 // pred_region
          _
        $region106: #{mono4dgs_loss.1} parent=51 // pred_fallthru
          _
        // Predicated region
        $region107: #{mono4dgs_loss.1} parent=51 // pred_check
          %p1788 = pneg %p329
        $region108: #{mono4dgs_loss.1} parent=51 // pred_check_branch
          %1790 = sbr.rel (%p1788) target = $region110
        $region109: #{mono4dgs_loss.1} parent=51 // pred_region
          _
        $region110: #{mono4dgs_loss.1} parent=51 // pred_fallthru
          _
        // Predicated region
        $region111: #{mono4dgs_loss.1} parent=51 // pred_check
          %p1791 = pneg %p355
        $region112: #{mono4dgs_loss.1} parent=51 // pred_check_branch
          %1793 = sbr.rel (%p1791) target = $region114
        $region113: #{mono4dgs_loss.1} parent=51 // pred_region
          _
        $region114: #{mono4dgs_loss.1} parent=51 // pred_fallthru
          _
        // Predicated region
        $region115: #{mono4dgs_loss.1} parent=51 // pred_check
          %p1794 = pneg %p381
        $region116: #{mono4dgs_loss.1} parent=51 // pred_check_branch
          %1796 = sbr.rel (%p1794) target = $region118
        $region117: #{mono4dgs_loss.1} parent=51 // pred_region
          _
        $region118: #{mono4dgs_loss.1} parent=51 // pred_fallthru
          _
      $region52: #{mono4dgs_loss.1} parent=5 // pred_fallthru
        _
      %p1797 = scmp.le.s32.totalorder 2, %s29
      // Predicated region
      $region119: #{mono4dgs_loss.1} parent=5 // pred_check
        %p1798 = pneg %p1797
      $region120: #{mono4dgs_loss.1} parent=5 // pred_check_branch
        %1800 = sbr.rel (%p1798) target = $region122
      $region121: #{mono4dgs_loss.1} parent=5 // pred_region
        %s1801 = ssub.s32 %s29, 2
        // Predicated region
        $region123: #{mono4dgs_loss.1} parent=121 // pred_check
          %p1802 = pneg %p283
        $region124: #{mono4dgs_loss.1} parent=121 // pred_check_branch
          %1804 = sbr.rel (%p1802) target = $region126
        $region125: #{mono4dgs_loss.1} parent=121 // pred_region
          %p1805 = scmp.lt.s32.totalorder %s40, 1
          %s1806 = scalar_select %p1805, %s40, 1
          %s1807 = smul.addr %s1806, 8
          %s1808 = scalar_lea.vmem %s8, %s1807
        $region126: #{mono4dgs_loss.1} parent=121 // pred_fallthru
          _
        // Predicated region
        $region127: #{mono4dgs_loss.1} parent=121 // pred_check
          %p1809 = pneg %p309
        $region128: #{mono4dgs_loss.1} parent=121 // pred_check_branch
          %1811 = sbr.rel (%p1809) target = $region130
        $region129: #{mono4dgs_loss.1} parent=121 // pred_region
          %p1812 = scmp.lt.s32.totalorder %s40, 1
          %s1813 = scalar_select %p1812, %s40, 1
          %s1814 = smul.addr %s1813, 8
          %s1815 = scalar_lea.vmem %s9, %s1814
        $region130: #{mono4dgs_loss.1} parent=121 // pred_fallthru
          _
        // Predicated region
        $region131: #{mono4dgs_loss.1} parent=121 // pred_check
          %p1816 = pneg %p335
        $region132: #{mono4dgs_loss.1} parent=121 // pred_check_branch
          %1818 = sbr.rel (%p1816) target = $region134
        $region133: #{mono4dgs_loss.1} parent=121 // pred_region
          %p1819 = scmp.lt.s32.totalorder %s40, 1
          %s1820 = scalar_select %p1819, %s40, 1
          %s1821 = smul.addr %s1820, 8
          %s1822 = scalar_lea.vmem %s10, %s1821
        $region134: #{mono4dgs_loss.1} parent=121 // pred_fallthru
          _
        // Predicated region
        $region135: #{mono4dgs_loss.1} parent=121 // pred_check
          %p1823 = pneg %p361
        $region136: #{mono4dgs_loss.1} parent=121 // pred_check_branch
          %1825 = sbr.rel (%p1823) target = $region138
        $region137: #{mono4dgs_loss.1} parent=121 // pred_region
          %p1826 = scmp.lt.s32.totalorder %s40, 1
          %s1827 = scalar_select %p1826, %s40, 1
          %s1828 = smul.addr %s1827, 8
          %s1829 = scalar_lea.vmem %s11, %s1828
        $region138: #{mono4dgs_loss.1} parent=121 // pred_fallthru
          _
        // Predicated region
        $region139: #{mono4dgs_loss.1} parent=121 // pred_check
          %p1830 = pneg %p387
        $region140: #{mono4dgs_loss.1} parent=121 // pred_check_branch
          %1832 = sbr.rel (%p1830) target = $region142
        $region141: #{mono4dgs_loss.1} parent=121 // pred_region
          %p1833 = scmp.lt.s32.totalorder %s40, 1
          %s1834 = scalar_select %p1833, %s40, 1
          %s1835 = smul.addr %s1834, 8
          %s1836 = scalar_lea.vmem %s12, %s1835
        $region142: #{mono4dgs_loss.1} parent=121 // pred_fallthru
          _
      $region122: #{mono4dgs_loss.1} parent=5 // pred_fallthru
        _
    $region6: #{mono4dgs_loss.1} parent=1 // loop_footer
      %s33 = sadd.s32 1, %s29
    $region7: #{mono4dgs_loss.1} parent=1 // loop_footer_branch
      %28 = sbr.rel target = $region3
    $region8: #{mono4dgs_loss.1} parent=1 // loop_exit
      _
    %1837 = vsyncpa [#allocation3], 1
    %s1838 = scalar_lea.sflag [#allocation3], 1
    %1839 = vsyncpa %s1838, 1
    %1840 = vsyncpa [#allocation5], 1
    %s1841 = scalar_lea.sflag [#allocation5], 1
    %1842 = vsyncpa %s1841, 1
    %1843 = vsyncpa [#allocation8], 1
    %s1844 = scalar_lea.sflag [#allocation8], 1
    %1845 = vsyncpa %s1844, 1
    %1846 = vsyncpa [#allocation11], 1

</llo_original>
